<compile_context>
chip_gen: v6e
topology: v6e:2x2x1
jax: 0.10.0
libtpu: 0.0.40
codegen_flags: <defaults>
</compile_context>

<pallas_src>
import functools

import numpy as np
import jax
import jax.numpy as jnp
from jax import lax
from jax.experimental import pallas as pl
from jax.experimental.pallas import tpu as pltpu


# ----------------------------------------------------------------------------
# Pallas kernel: banded 3x3x3 conv (optionally with fused nearest (1,2,2)
# upsample) in the (T, H, W*C)-lanes layout.
# ----------------------------------------------------------------------------
def _banded_conv_kernel(x_ref, w_ref, b_ref, o_ref, p_ref, *,
                        taps, n_phase, leaky_relu):
    # x_ref: (1, T, Hin, Lin)          bf16, Lin = Win*Cin
    # w_ref: (n_taps, Lin, Nout)       bf16, Nout = Wout*Cout (banded weights)
    # b_ref: (1, Nout)                 f32 (bias tiled over Wout)
    # o_ref: (1, T, Hin, n_phase*Nout) out dtype
    # p_ref: (T+2, Hin+2, Lin)         bf16 VMEM scratch (in-kernel zero pad)
    _, T, Hin, Lin = x_ref.shape
    _, _, Nout = w_ref.shape
    M = T * Hin

    # In-kernel zero padding of the T/H borders (W padding is folded into the
    # banded weights), so no padded copy of the activation ever hits HBM.
    p_ref[...] = jnp.zeros(p_ref.shape, p_ref.dtype)
    p_ref[1:T + 1, 1:Hin + 1, :] = x_ref[0]

    bias = b_ref[...]                                     # (1, Nout) f32
    for ph in range(n_phase):
        acc = jnp.zeros((M, Nout), jnp.float32)
        for idx, (dt, roff, tph) in enumerate(taps):
            if tph != ph:
                continue
            # Slices are over untiled outer dims; reshape is layout-preserving
            # (Hin % 8 == 0), so the matmul lhs needs no relayout copy.
            lhs = p_ref[dt:dt + T, roff:roff + Hin, :].reshape(M, Lin)
            acc = acc + jnp.dot(lhs, w_ref[idx],
                                preferred_element_type=jnp.float32)
        acc = acc + bias
        if leaky_relu:
            acc = jnp.where(acc > 0, acc, 0.2 * acc)
        o_ref[0, :, :, ph * Nout:(ph + 1) * Nout] = (
            acc.reshape(T, Hin, Nout).astype(o_ref.dtype))


def _banded_conv_call(x, w_band, bias, *, taps, n_phase, leaky_relu,
                      out_dtype):
    N, T, Hin, Lin = x.shape
    n_taps, _, Nout = w_band.shape
    kernel = functools.partial(_banded_conv_kernel, taps=taps,
                               n_phase=n_phase, leaky_relu=leaky_relu)
    return pl.pallas_call(
        kernel,
        out_shape=jax.ShapeDtypeStruct((N, T, Hin, n_phase * Nout), out_dtype),
        grid_spec=pltpu.PrefetchScalarGridSpec(
            num_scalar_prefetch=0,
            grid=(N,),
            in_specs=[
                pl.BlockSpec((1, T, Hin, Lin), lambda n: (n, 0, 0, 0)),
                pl.BlockSpec((n_taps, Lin, Nout), lambda n: (0, 0, 0)),
                pl.BlockSpec((1, Nout), lambda n: (0, 0)),
            ],
            out_specs=pl.BlockSpec((1, T, Hin, n_phase * Nout),
                                   lambda n: (n, 0, 0, 0)),
            scratch_shapes=[pltpu.VMEM((T + 2, Hin + 2, Lin), jnp.bfloat16)],
        ),
        compiler_params=pltpu.CompilerParams(
            dimension_semantics=("parallel",),
            vmem_limit_bytes=32 * 1024 * 1024),
    )(x, w_band, bias)


# ----------------------------------------------------------------------------
# Wrapper-side weight preprocessing: build banded (and phase-collapsed)
# weight matrices so the kernel only does lane-dense matmuls.
# ----------------------------------------------------------------------------
def _w_shift_mats(win, upsample):
    """mats[dw, wsrc, wout] = 1 if original tap dw connects input column wsrc
    to output column wout (zero-padding / nearest-upsample folded in)."""
    wout_n = 2 * win if upsample else win
    mats = np.zeros((3, win, wout_n), np.float32)
    for dw in range(3):
        for w2 in range(wout_n):
            if upsample:
                om = w2 + dw - 1          # position in upsampled (padded) space
                if 0 <= om < 2 * win:
                    mats[dw, om // 2, w2] = 1.0
            else:
                ws = w2 + dw - 1
                if 0 <= ws < win:
                    mats[dw, ws, w2] = 1.0
    return jnp.asarray(mats)


def _build_banded_weights(wgt, b, win, upsample):
    """wgt: (3,3,3,Cin,Cout) f32 -> (taps, band bf16, bias f32, n_phase, wout).

    band[tap] has shape (win*Cin, wout*Cout); taps[i] = (dt, row_offset, phase).
    """
    cin, cout = wgt.shape[3], wgt.shape[4]
    S = _w_shift_mats(win, upsample)                    # (3, win, wout)
    wout = S.shape[2]
    if upsample:
        # Collapse the 3 H-taps over upsampled rows into phase-dependent
        # 2-tap combinations: phase 0 -> [k0, k1+k2], phase 1 -> [k0+k1, k2].
        c_ph = jnp.asarray(np.array([[[1., 0., 0.], [0., 1., 1.]],
                                     [[1., 1., 0.], [0., 0., 1.]]],
                                    np.float32))        # (ph, jh, dh)
        band = jnp.einsum('pjb,dsw,abdio->pajsiwo', c_ph, S, wgt)
        band = band.reshape(2 * 3 * 2, win * cin, wout * cout)
        taps = tuple((dt, ph + jh, ph)
                     for ph in range(2) for dt in range(3) for jh in range(2))
        n_phase = 2
    else:
        band = jnp.einsum('dsw,abdio->absiwo', S, wgt)
        band = band.reshape(9, win * cin, wout * cout)
        taps = tuple((dt, dh, 0) for dt in range(3) for dh in range(3))
        n_phase = 1
    bias = jnp.tile(b, wout)[None].astype(jnp.float32)  # (1, wout*Cout)
    return taps, band.astype(jnp.bfloat16), bias, n_phase, wout


# ----------------------------------------------------------------------------
# UpSampleModule in JAX (weights built deterministically in-script).
# ----------------------------------------------------------------------------
class UpSampleModulePallas:
    def __init__(self, nc_in, nc_out, nf, key):
        # (cin, cout, fused_upsample, leaky_relu)
        self.layer_cfg = [
            (nc_in, nf * 2, True, True),      # deconv1
            (nf * 2, nf * 2, False, True),    # conv9
            (nf * 2, nf, True, True),         # deconv2
            (nf, nf // 2, False, True),       # conv10
            (nf // 2, nc_out, False, False),  # conv11 (no activation)
        ]
        self.params = []
        keys = jax.random.split(key, len(self.layer_cfg))
        for k, (cin, cout, _, _) in zip(keys, self.layer_cfg):
            kw, kb = jax.random.split(k)
            fan_in = cin * 27
            w = jax.random.normal(kw, (3, 3, 3, cin, cout), jnp.float32)
            w = w / jnp.sqrt(jnp.float32(fan_in))
            b = 0.01 * jax.random.normal(kb, (cout,), jnp.float32)
            self.params.append((w, b))

    def __call__(self, inp):
        # inp = (c8, c4, c2) in NCTHW; use_skip_connection=False -> only c8.
        c8, _c4, _c2 = inp
        N, C0, T, H, W = c8.shape
        x = jnp.transpose(c8, (0, 2, 3, 4, 1))            # -> NTHWC
        x = x.reshape(N, T, H, W * C0).astype(jnp.bfloat16)
        cur_w = W
        n_layers = len(self.layer_cfg)
        for li, ((wgt, b), (cin, cout, up, leaky)) in enumerate(
                zip(self.params, self.layer_cfg)):
            assert x.shape[-1] == cur_w * cin
            taps, w_band, bias, n_phase, wout = _build_banded_weights(
                wgt, b, cur_w, up)
            out_dtype = jnp.float32 if li == n_layers - 1 else jnp.bfloat16
            hin = x.shape[2]
            x = _banded_conv_call(x, w_band, bias, taps=taps,
                                  n_phase=n_phase, leaky_relu=leaky,
                                  out_dtype=out_dtype)
            if up:
                # per-row phase packing (1, T, Hin, 2*Wout*Cout)
                #   -> logical (1, T, 2*Hin, Wout*Cout)  (contiguous reshape)
                x = x.reshape(N, T, 2 * hin, wout * cout)
            cur_w = wout
        hf = x.shape[2]
        x = x.reshape(N, T, hf, cur_w, -1)                # -> NTHWC
        return jnp.transpose(x, (0, 4, 1, 2, 3))          # -> NCTHW


# ----------------------------------------------------------------------------
# Pure-JAX reference (lax.conv_general_dilated) for correctness check.
# ----------------------------------------------------------------------------
def _ref_conv3d(x_ncthw, w, b, *, leaky_relu):
    w_oidhw = jnp.transpose(w, (4, 3, 0, 1, 2))
    y = lax.conv_general_dilated(
        x_ncthw, w_oidhw, window_strides=(1, 1, 1),
        padding=((1, 1), (1, 1), (1, 1)),
        dimension_numbers=("NCDHW", "OIDHW", "NCDHW"))
    y = y + b[None, :, None, None, None]
    if leaky_relu:
        y = jnp.where(y > 0, y, 0.2 * y)
    return y


def _ref_forward(mod, c8):
    def up(x):  # nearest (1,2,2) in NCTHW
        x = jnp.repeat(x, 2, axis=3)
        x = jnp.repeat(x, 2, axis=4)
        return x

    (w1, b1), (w2, b2), (w3, b3), (w4, b4), (w5, b5) = mod.params
    d1 = _ref_conv3d(up(c8), w1, b1, leaky_relu=True)
    c9 = _ref_conv3d(d1, w2, b2, leaky_relu=True)
    d2 = _ref_conv3d(up(c9), w3, b3, leaky_relu=True)
    c10 = _ref_conv3d(d2, w4, b4, leaky_relu=True)
    return _ref_conv3d(c10, w5, b5, leaky_relu=False)


if __name__ == "__main__":
    key = jax.random.PRNGKey(0)
    k_params, k8, k4, k2 = jax.random.split(key, 4)

    # Small shapes: N=2, nc_in=4, nc_out=3, nf=8, T=2, c8 spatial 8x8
    N, nc_in, nc_out, nf, T, H, W = 2, 4, 3, 8, 2, 8, 8
    c8 = jax.random.normal(k8, (N, nc_in, T, H, W), jnp.float32)
    # c4 / c2 are unused when use_skip_connection=False but forward unpacks 3
    c4 = jax.random.normal(k4, (N, nf * 2, T, 2 * H, 2 * W), jnp.float32)
    c2 = jax.random.normal(k2, (N, nf, T, 4 * H, 4 * W), jnp.float32)

    module = UpSampleModulePallas(nc_in, nc_out, nf, k_params)

    out = module((c8, c4, c2))
    out = jax.block_until_ready(out)

    assert out.shape == (N, nc_out, T, 4 * H, 4 * W), out.shape

    ref = jax.block_until_ready(_ref_forward(module, c8))
    # bf16 activation/weight I/O (per perf feedback) vs. an all-f32 reference:
    # tolerance sized for bf16 rounding accumulated over the 5-layer chain.
    err = float(jnp.max(jnp.abs(out - ref)))
    assert err < 1e-1, f"max abs err {err}"

    print("KERNEL_OK")
</pallas_src>

<mosaic_0001>
module attributes {stable_mosaic.version = 11 : i64} {
  func.func @_banded_conv_kernel(%arg0: i32, %arg1: memref<1x2x8x32xbf16, #tpu.memory_space<vmem>>, %arg2: memref<12x32x256xbf16, #tpu.memory_space<vmem>>, %arg3: memref<1x256xf32, #tpu.memory_space<vmem>>, %arg4: memref<1x2x8x512xbf16, #tpu.memory_space<vmem>>, %arg5: memref<4x10x32xbf16, #tpu.memory_space<vmem>>) attributes {dimension_semantics = [#tpu.dimension_semantics<parallel>], iteration_bounds = array<i64: 2>, scalar_prefetch = 0 : i64, scratch_operands = 1 : i64, tpu.core_type = #tpu.core_type<tc>, window_params = [{transform_indices = @transform_0, window_bounds = array<i64: 1, 2, 8, 32>}, {pipeline_mode = #tpu.pipeline_mode<synchronous>, transform_indices = @transform_1, window_bounds = array<i64: 12, 32, 256>}, {pipeline_mode = #tpu.pipeline_mode<synchronous>, transform_indices = @transform_2, window_bounds = array<i64: 1, 256>}, {transform_indices = @transform_3, window_bounds = array<i64: 1, 2, 8, 512>}]} {
    %cst = arith.constant 0.000000e+00 : bf16
    %0 = vector.broadcast %cst : bf16 to vector<4x10x32xbf16>
    %c0 = arith.constant 0 : index
    %c0_0 = arith.constant 0 : index
    %c0_1 = arith.constant 0 : index
    %1 = vector.load %arg5[%c0, %c0_0, %c0_1] : memref<4x10x32xbf16, #tpu.memory_space<vmem>>, vector<4x10x32xbf16>
    tpu.vector_store %arg5[%c0, %c0_0, %c0_1], %0 {strides = array<i32>} : memref<4x10x32xbf16, #tpu.memory_space<vmem>>, vector<4x10x32xbf16>,
    %c0_2 = arith.constant 0 : index
    %c0_3 = arith.constant 0 : index
    %c0_4 = arith.constant 0 : index
    %c0_5 = arith.constant 0 : index
    %2 = vector.load %arg1[%c0_2, %c0_3, %c0_4, %c0_5] : memref<1x2x8x32xbf16, #tpu.memory_space<vmem>>, vector<1x2x8x32xbf16>
    %3 = vector.shape_cast %2 : vector<1x2x8x32xbf16> to vector<2x8x32xbf16>
    %c1 = arith.constant 1 : index
    %c1_6 = arith.constant 1 : index
    %c0_7 = arith.constant 0 : index
    %4 = vector.load %arg5[%c1, %c1_6, %c0_7] : memref<4x10x32xbf16, #tpu.memory_space<vmem>>, vector<2x8x32xbf16>
    tpu.vector_store %arg5[%c1, %c1_6, %c0_7], %3 {strides = array<i32>} : memref<4x10x32xbf16, #tpu.memory_space<vmem>>, vector<2x8x32xbf16>,
    %c0_8 = arith.constant 0 : index
    %c0_9 = arith.constant 0 : index
    %5 = vector.load %arg3[%c0_8, %c0_9] : memref<1x256xf32, #tpu.memory_space<vmem>>, vector<1x256xf32>
    %cst_10 = arith.constant 0.000000e+00 : f32
    %6 = vector.broadcast %cst_10 : f32 to vector<16x256xf32>
    %c0_11 = arith.constant 0 : index
    %c0_12 = arith.constant 0 : index
    %c0_13 = arith.constant 0 : index
    %7 = vector.load %arg5[%c0_11, %c0_12, %c0_13] : memref<4x10x32xbf16, #tpu.memory_space<vmem>>, vector<2x8x32xbf16>
    %8 = vector.shape_cast %7 : vector<2x8x32xbf16> to vector<16x32xbf16>
    %c0_14 = arith.constant 0 : index
    %c0_15 = arith.constant 0 : index
    %c0_16 = arith.constant 0 : index
    %9 = vector.load %arg2[%c0_14, %c0_15, %c0_16] : memref<12x32x256xbf16, #tpu.memory_space<vmem>>, vector<1x32x256xbf16>
    %10 = vector.shape_cast %9 : vector<1x32x256xbf16> to vector<32x256xbf16>
    %cst_17 = arith.constant dense<0.000000e+00> : vector<16x256xf32>
    %11 = tpu.matmul %8, %10, %cst_17 {dimension_numbers = #tpu.dot_dimension_numbers<[1], [0], [0], [1], [0, 0, 1, 1], [], []>} : vector<16x32xbf16>, vector<32x256xbf16>, vector<16x256xf32> -> vector<16x256xf32>
    %12 = arith.addf %6, %11 : vector<16x256xf32>
    %c0_18 = arith.constant 0 : index
    %c1_19 = arith.constant 1 : index
    %c0_20 = arith.constant 0 : index
    %13 = vector.load %arg5[%c0_18, %c1_19, %c0_20] : memref<4x10x32xbf16, #tpu.memory_space<vmem>>, vector<2x8x32xbf16>
    %14 = vector.shape_cast %13 : vector<2x8x32xbf16> to vector<16x32xbf16>
    %c1_21 = arith.constant 1 : index
    %c0_22 = arith.constant 0 : index
    %c0_23 = arith.constant 0 : index
    %15 = vector.load %arg2[%c1_21, %c0_22, %c0_23] : memref<12x32x256xbf16, #tpu.memory_space<vmem>>, vector<1x32x256xbf16>
    %16 = vector.shape_cast %15 : vector<1x32x256xbf16> to vector<32x256xbf16>
    %cst_24 = arith.constant dense<0.000000e+00> : vector<16x256xf32>
    %17 = tpu.matmul %14, %16, %cst_24 {dimension_numbers = #tpu.dot_dimension_numbers<[1], [0], [0], [1], [0, 0, 1, 1], [], []>} : vector<16x32xbf16>, vector<32x256xbf16>, vector<16x256xf32> -> vector<16x256xf32>
    %18 = arith.addf %12, %17 : vector<16x256xf32>
    %c1_25 = arith.constant 1 : index
    %c0_26 = arith.constant 0 : index
    %c0_27 = arith.constant 0 : index
    %19 = vector.load %arg5[%c1_25, %c0_26, %c0_27] : memref<4x10x32xbf16, #tpu.memory_space<vmem>>, vector<2x8x32xbf16>
    %20 = vector.shape_cast %19 : vector<2x8x32xbf16> to vector<16x32xbf16>
    %c2 = arith.constant 2 : index
    %c0_28 = arith.constant 0 : index
    %c0_29 = arith.constant 0 : index
    %21 = vector.load %arg2[%c2, %c0_28, %c0_29] : memref<12x32x256xbf16, #tpu.memory_space<vmem>>, vector<1x32x256xbf16>
    %22 = vector.shape_cast %21 : vector<1x32x256xbf16> to vector<32x256xbf16>
    %cst_30 = arith.constant dense<0.000000e+00> : vector<16x256xf32>
    %23 = tpu.matmul %20, %22, %cst_30 {dimension_numbers = #tpu.dot_dimension_numbers<[1], [0], [0], [1], [0, 0, 1, 1], [], []>} : vector<16x32xbf16>, vector<32x256xbf16>, vector<16x256xf32> -> vector<16x256xf32>
    %24 = arith.addf %18, %23 : vector<16x256xf32>
    %c1_31 = arith.constant 1 : index
    %c1_32 = arith.constant 1 : index
    %c0_33 = arith.constant 0 : index
    %25 = vector.load %arg5[%c1_31, %c1_32, %c0_33] : memref<4x10x32xbf16, #tpu.memory_space<vmem>>, vector<2x8x32xbf16>
    %26 = vector.shape_cast %25 : vector<2x8x32xbf16> to vector<16x32xbf16>
    %c3 = arith.constant 3 : index
    %c0_34 = arith.constant 0 : index
    %c0_35 = arith.constant 0 : index
    %27 = vector.load %arg2[%c3, %c0_34, %c0_35] : memref<12x32x256xbf16, #tpu.memory_space<vmem>>, vector<1x32x256xbf16>
    %28 = vector.shape_cast %27 : vector<1x32x256xbf16> to vector<32x256xbf16>
    %cst_36 = arith.constant dense<0.000000e+00> : vector<16x256xf32>
    %29 = tpu.matmul %26, %28, %cst_36 {dimension_numbers = #tpu.dot_dimension_numbers<[1], [0], [0], [1], [0, 0, 1, 1], [], []>} : vector<16x32xbf16>, vector<32x256xbf16>, vector<16x256xf32> -> vector<16x256xf32>
    %30 = arith.addf %24, %29 : vector<16x256xf32>
    %c2_37 = arith.constant 2 : index
    %c0_38 = arith.constant 0 : index
    %c0_39 = arith.constant 0 : index
    %31 = vector.load %arg5[%c2_37, %c0_38, %c0_39] : memref<4x10x32xbf16, #tpu.memory_space<vmem>>, vector<2x8x32xbf16>
    %32 = vector.shape_cast %31 : vector<2x8x32xbf16> to vector<16x32xbf16>
    %c4 = arith.constant 4 : index
    %c0_40 = arith.constant 0 : index
    %c0_41 = arith.constant 0 : index
    %33 = vector.load %arg2[%c4, %c0_40, %c0_41] : memref<12x32x256xbf16, #tpu.memory_space<vmem>>, vector<1x32x256xbf16>
    %34 = vector.shape_cast %33 : vector<1x32x256xbf16> to vector<32x256xbf16>
    %cst_42 = arith.constant dense<0.000000e+00> : vector<16x256xf32>
    %35 = tpu.matmul %32, %34, %cst_42 {dimension_numbers = #tpu.dot_dimension_numbers<[1], [0], [0], [1], [0, 0, 1, 1], [], []>} : vector<16x32xbf16>, vector<32x256xbf16>, vector<16x256xf32> -> vector<16x256xf32>
    %36 = arith.addf %30, %35 : vector<16x256xf32>
    %c2_43 = arith.constant 2 : index
    %c1_44 = arith.constant 1 : index
    %c0_45 = arith.constant 0 : index
    %37 = vector.load %arg5[%c2_43, %c1_44, %c0_45] : memref<4x10x32xbf16, #tpu.memory_space<vmem>>, vector<2x8x32xbf16>
    %38 = vector.shape_cast %37 : vector<2x8x32xbf16> to vector<16x32xbf16>
    %c5 = arith.constant 5 : index
    %c0_46 = arith.constant 0 : index
    %c0_47 = arith.constant 0 : index
    %39 = vector.load %arg2[%c5, %c0_46, %c0_47] : memref<12x32x256xbf16, #tpu.memory_space<vmem>>, vector<1x32x256xbf16>
    %40 = vector.shape_cast %39 : vector<1x32x256xbf16> to vector<32x256xbf16>
    %cst_48 = arith.constant dense<0.000000e+00> : vector<16x256xf32>
    %41 = tpu.matmul %38, %40, %cst_48 {dimension_numbers = #tpu.dot_dimension_numbers<[1], [0], [0], [1], [0, 0, 1, 1], [], []>} : vector<16x32xbf16>, vector<32x256xbf16>, vector<16x256xf32> -> vector<16x256xf32>
    %42 = arith.addf %36, %41 : vector<16x256xf32>
    %43 = vector.broadcast %5 : vector<1x256xf32> to vector<16x256xf32>
    %44 = arith.addf %42, %43 : vector<16x256xf32>
    %cst_49 = arith.constant 0.000000e+00 : f32
    %45 = vector.broadcast %cst_49 : f32 to vector<16x256xf32>
    %46 = arith.cmpf ogt, %44, %45 : vector<16x256xf32>
    %cst_50 = arith.constant 2.000000e-01 : f32
    %47 = vector.broadcast %cst_50 : f32 to vector<16x256xf32>
    %48 = arith.mulf %47, %44 : vector<16x256xf32>
    %49 = arith.select %46, %44, %48 : vector<16x256xi1>, vector<16x256xf32>
    %50 = vector.shape_cast %49 : vector<16x256xf32> to vector<2x8x256xf32>
    %51 = arith.truncf %50 : vector<2x8x256xf32> to vector<2x8x256xbf16>
    %c0_51 = arith.constant 0 : index
    %c0_52 = arith.constant 0 : index
    %c0_53 = arith.constant 0 : index
    %c0_54 = arith.constant 0 : index
    %52 = vector.load %arg4[%c0_51, %c0_52, %c0_53, %c0_54] : memref<1x2x8x512xbf16, #tpu.memory_space<vmem>>, vector<1x2x8x256xbf16>
    %53 = vector.shape_cast %52 : vector<1x2x8x256xbf16> to vector<2x8x256xbf16>
    %54 = vector.shape_cast %51 : vector<2x8x256xbf16> to vector<1x2x8x256xbf16>
    tpu.vector_store %arg4[%c0_51, %c0_52, %c0_53, %c0_54], %54 {strides = array<i32>} : memref<1x2x8x512xbf16, #tpu.memory_space<vmem>>, vector<1x2x8x256xbf16>,
    %cst_55 = arith.constant 0.000000e+00 : f32
    %55 = vector.broadcast %cst_55 : f32 to vector<16x256xf32>
    %c0_56 = arith.constant 0 : index
    %c1_57 = arith.constant 1 : index
    %c0_58 = arith.constant 0 : index
    %56 = vector.load %arg5[%c0_56, %c1_57, %c0_58] : memref<4x10x32xbf16, #tpu.memory_space<vmem>>, vector<2x8x32xbf16>
    %57 = vector.shape_cast %56 : vector<2x8x32xbf16> to vector<16x32xbf16>
    %c6 = arith.constant 6 : index
    %c0_59 = arith.constant 0 : index
    %c0_60 = arith.constant 0 : index
    %58 = vector.load %arg2[%c6, %c0_59, %c0_60] : memref<12x32x256xbf16, #tpu.memory_space<vmem>>, vector<1x32x256xbf16>
    %59 = vector.shape_cast %58 : vector<1x32x256xbf16> to vector<32x256xbf16>
    %cst_61 = arith.constant dense<0.000000e+00> : vector<16x256xf32>
    %60 = tpu.matmul %57, %59, %cst_61 {dimension_numbers = #tpu.dot_dimension_numbers<[1], [0], [0], [1], [0, 0, 1, 1], [], []>} : vector<16x32xbf16>, vector<32x256xbf16>, vector<16x256xf32> -> vector<16x256xf32>
    %61 = arith.addf %55, %60 : vector<16x256xf32>
    %c0_62 = arith.constant 0 : index
    %c2_63 = arith.constant 2 : index
    %c0_64 = arith.constant 0 : index
    %62 = vector.load %arg5[%c0_62, %c2_63, %c0_64] : memref<4x10x32xbf16, #tpu.memory_space<vmem>>, vector<2x8x32xbf16>
    %63 = vector.shape_cast %62 : vector<2x8x32xbf16> to vector<16x32xbf16>
    %c7 = arith.constant 7 : index
    %c0_65 = arith.constant 0 : index
    %c0_66 = arith.constant 0 : index
    %64 = vector.load %arg2[%c7, %c0_65, %c0_66] : memref<12x32x256xbf16, #tpu.memory_space<vmem>>, vector<1x32x256xbf16>
    %65 = vector.shape_cast %64 : vector<1x32x256xbf16> to vector<32x256xbf16>
    %cst_67 = arith.constant dense<0.000000e+00> : vector<16x256xf32>
    %66 = tpu.matmul %63, %65, %cst_67 {dimension_numbers = #tpu.dot_dimension_numbers<[1], [0], [0], [1], [0, 0, 1, 1], [], []>} : vector<16x32xbf16>, vector<32x256xbf16>, vector<16x256xf32> -> vector<16x256xf32>
    %67 = arith.addf %61, %66 : vector<16x256xf32>
    %c1_68 = arith.constant 1 : index
    %c1_69 = arith.constant 1 : index
    %c0_70 = arith.constant 0 : index
    %68 = vector.load %arg5[%c1_68, %c1_69, %c0_70] : memref<4x10x32xbf16, #tpu.memory_space<vmem>>, vector<2x8x32xbf16>
    %69 = vector.shape_cast %68 : vector<2x8x32xbf16> to vector<16x32xbf16>
    %c8 = arith.constant 8 : index
    %c0_71 = arith.constant 0 : index
    %c0_72 = arith.constant 0 : index
    %70 = vector.load %arg2[%c8, %c0_71, %c0_72] : memref<12x32x256xbf16, #tpu.memory_space<vmem>>, vector<1x32x256xbf16>
    %71 = vector.shape_cast %70 : vector<1x32x256xbf16> to vector<32x256xbf16>
    %cst_73 = arith.constant dense<0.000000e+00> : vector<16x256xf32>
    %72 = tpu.matmul %69, %71, %cst_73 {dimension_numbers = #tpu.dot_dimension_numbers<[1], [0], [0], [1], [0, 0, 1, 1], [], []>} : vector<16x32xbf16>, vector<32x256xbf16>, vector<16x256xf32> -> vector<16x256xf32>
    %73 = arith.addf %67, %72 : vector<16x256xf32>
    %c1_74 = arith.constant 1 : index
    %c2_75 = arith.constant 2 : index
    %c0_76 = arith.constant 0 : index
    %74 = vector.load %arg5[%c1_74, %c2_75, %c0_76] : memref<4x10x32xbf16, #tpu.memory_space<vmem>>, vector<2x8x32xbf16>
    %75 = vector.shape_cast %74 : vector<2x8x32xbf16> to vector<16x32xbf16>
    %c9 = arith.constant 9 : index
    %c0_77 = arith.constant 0 : index
    %c0_78 = arith.constant 0 : index
    %76 = vector.load %arg2[%c9, %c0_77, %c0_78] : memref<12x32x256xbf16, #tpu.memory_space<vmem>>, vector<1x32x256xbf16>
    %77 = vector.shape_cast %76 : vector<1x32x256xbf16> to vector<32x256xbf16>
    %cst_79 = arith.constant dense<0.000000e+00> : vector<16x256xf32>
    %78 = tpu.matmul %75, %77, %cst_79 {dimension_numbers = #tpu.dot_dimension_numbers<[1], [0], [0], [1], [0, 0, 1, 1], [], []>} : vector<16x32xbf16>, vector<32x256xbf16>, vector<16x256xf32> -> vector<16x256xf32>
    %79 = arith.addf %73, %78 : vector<16x256xf32>
    %c2_80 = arith.constant 2 : index
    %c1_81 = arith.constant 1 : index
    %c0_82 = arith.constant 0 : index
    %80 = vector.load %arg5[%c2_80, %c1_81, %c0_82] : memref<4x10x32xbf16, #tpu.memory_space<vmem>>, vector<2x8x32xbf16>
    %81 = vector.shape_cast %80 : vector<2x8x32xbf16> to vector<16x32xbf16>
    %c10 = arith.constant 10 : index
    %c0_83 = arith.constant 0 : index
    %c0_84 = arith.constant 0 : index
    %82 = vector.load %arg2[%c10, %c0_83, %c0_84] : memref<12x32x256xbf16, #tpu.memory_space<vmem>>, vector<1x32x256xbf16>
    %83 = vector.shape_cast %82 : vector<1x32x256xbf16> to vector<32x256xbf16>
    %cst_85 = arith.constant dense<0.000000e+00> : vector<16x256xf32>
    %84 = tpu.matmul %81, %83, %cst_85 {dimension_numbers = #tpu.dot_dimension_numbers<[1], [0], [0], [1], [0, 0, 1, 1], [], []>} : vector<16x32xbf16>, vector<32x256xbf16>, vector<16x256xf32> -> vector<16x256xf32>
    %85 = arith.addf %79, %84 : vector<16x256xf32>
    %c2_86 = arith.constant 2 : index
    %c2_87 = arith.constant 2 : index
    %c0_88 = arith.constant 0 : index
    %86 = vector.load %arg5[%c2_86, %c2_87, %c0_88] : memref<4x10x32xbf16, #tpu.memory_space<vmem>>, vector<2x8x32xbf16>
    %87 = vector.shape_cast %86 : vector<2x8x32xbf16> to vector<16x32xbf16>
    %c11 = arith.constant 11 : index
    %c0_89 = arith.constant 0 : index
    %c0_90 = arith.constant 0 : index
    %88 = vector.load %arg2[%c11, %c0_89, %c0_90] : memref<12x32x256xbf16, #tpu.memory_space<vmem>>, vector<1x32x256xbf16>
    %89 = vector.shape_cast %88 : vector<1x32x256xbf16> to vector<32x256xbf16>
    %cst_91 = arith.constant dense<0.000000e+00> : vector<16x256xf32>
    %90 = tpu.matmul %87, %89, %cst_91 {dimension_numbers = #tpu.dot_dimension_numbers<[1], [0], [0], [1], [0, 0, 1, 1], [], []>} : vector<16x32xbf16>, vector<32x256xbf16>, vector<16x256xf32> -> vector<16x256xf32>
    %91 = arith.addf %85, %90 : vector<16x256xf32>
    %92 = vector.broadcast %5 : vector<1x256xf32> to vector<16x256xf32>
    %93 = arith.addf %91, %92 : vector<16x256xf32>
    %cst_92 = arith.constant 0.000000e+00 : f32
    %94 = vector.broadcast %cst_92 : f32 to vector<16x256xf32>
    %95 = arith.cmpf ogt, %93, %94 : vector<16x256xf32>
    %cst_93 = arith.constant 2.000000e-01 : f32
    %96 = vector.broadcast %cst_93 : f32 to vector<16x256xf32>
    %97 = arith.mulf %96, %93 : vector<16x256xf32>
    %98 = arith.select %95, %93, %97 : vector<16x256xi1>, vector<16x256xf32>
    %99 = vector.shape_cast %98 : vector<16x256xf32> to vector<2x8x256xf32>
    %100 = arith.truncf %99 : vector<2x8x256xf32> to vector<2x8x256xbf16>
    %c0_94 = arith.constant 0 : index
    %c0_95 = arith.constant 0 : index
    %c0_96 = arith.constant 0 : index
    %c256 = arith.constant 256 : index
    %101 = vector.load %arg4[%c0_94, %c0_95, %c0_96, %c256] : memref<1x2x8x512xbf16, #tpu.memory_space<vmem>>, vector<1x2x8x256xbf16>
    %102 = vector.shape_cast %101 : vector<1x2x8x256xbf16> to vector<2x8x256xbf16>
    %103 = vector.shape_cast %100 : vector<2x8x256xbf16> to vector<1x2x8x256xbf16>
    tpu.vector_store %arg4[%c0_94, %c0_95, %c0_96, %c256], %103 {strides = array<i32>} : memref<1x2x8x512xbf16, #tpu.memory_space<vmem>>, vector<1x2x8x256xbf16>,
    return
  }
  func.func @transform_0(%arg0: i32) -> (i32, i32, i32, i32) {
    %c0_i32 = arith.constant 0 : i32
    %c0_i32_0 = arith.constant 0 : i32
    %c0_i32_1 = arith.constant 0 : i32
    %c0_i32_2 = arith.constant 0 : i32
    return %arg0, %c0_i32, %c0_i32_0, %c0_i32_1 : i32, i32, i32, i32
  }
  func.func @transform_1(%arg0: i32) -> (i32, i32, i32) {
    %c0_i32 = arith.constant 0 : i32
    %c0_i32_0 = arith.constant 0 : i32
    %c0_i32_1 = arith.constant 0 : i32
    %c0_i32_2 = arith.constant 0 : i32
    return %c0_i32, %c0_i32_0, %c0_i32_1 : i32, i32, i32
  }
  func.func @transform_2(%arg0: i32) -> (i32, i32) {
    %c0_i32 = arith.constant 0 : i32
    %c0_i32_0 = arith.constant 0 : i32
    %c0_i32_1 = arith.constant 0 : i32
    return %c0_i32, %c0_i32_0 : i32, i32
  }
  func.func @transform_3(%arg0: i32) -> (i32, i32, i32, i32) {
    %c0_i32 = arith.constant 0 : i32
    %c0_i32_0 = arith.constant 0 : i32
    %c0_i32_1 = arith.constant 0 : i32
    %c0_i32_2 = arith.constant 0 : i32
    return %arg0, %c0_i32, %c0_i32_0, %c0_i32_1 : i32, i32, i32, i32
  }
}

</mosaic_0001>

<llo_original>
// kernel: tpu_custom_call.1
$region0: #{tpu_custom_call.1}
  #allocation0 [shape = 'u32[]', space=smem, size = 0x4, offset = 0x4, fixed_abs, tag = 'smem constant byte address 0x4 - core index']
  #allocation1 [shape = 'u32[144,128]{1,0:T(1,128)}', space=vmem, size = 0x12000, scoped, tag = 'internal scratch']
  #allocation2 [shape = 'bf16[4,10,32]{2,1,0:T(8,128)(2,1)}', space=vmem, size = 0x4000, scoped, tag = 'scratch operand']
  %s0 = inlined_call_operand.hbm [shape: bf16[2,2,8,32], index: 0, kind: input, shape index: {}]
  %s1 = inlined_call_operand.hbm [shape: bf16[12,32,256], index: 1, kind: input, shape index: {}]
  %s2 = inlined_call_operand.vmem [shape: f32[1,256], index: 2, kind: input, shape index: {}]
  %s3 = inlined_call_operand.hbm [shape: bf16[2,2,8,512], index: 3, kind: output, shape index: {}]
  %s4 = sld [smem:[#allocation0]]
  $region53: #{tpu_custom_call.1} parent=0
    _
  %s6 = ssub.s32 1, %s4
  %s7 = scalar_select 0, %s6, %s4
  $region1: #{tpu_custom_call.1} parent=0
    #allocation3 [shape = 'u8[8192]{0}', space=vmem, size = 0x2000, scoped, tag = 'input window, operand 0']
    #allocation4 [shape = 's32[2]{0}', space=sflag, size = 0x8, scoped, tag = 'scoped memory for tpu_custom_call.1']
    #allocation5 [shape = 's32[2]{0}', space=sflag, size = 0x8, scoped, tag = 'scoped memory for tpu_custom_call.1']
    #allocation6 [shape = 'u8[196608]{0}', space=vmem, size = 0x30000, scoped, tag = 'input window, operand 1, single buffered']
    #allocation7 [shape = 's32[1]{0}', space=sflag, size = 0x4, scoped, tag = 'scoped memory for tpu_custom_call.1']
    #allocation8 [shape = 'u8[32768]{0}', space=vmem, size = 0x8000, scoped, tag = 'output window, operand 0']
    %8 = vsyncpa [#allocation4], 0
    %s9 = scalar_lea.sflag [#allocation4], 1
    %10 = vsyncpa %s9, 0
    %11 = vsyncpa [#allocation7], 0
    %12 = vsyncpa [#allocation5], 0
    %s13 = scalar_lea.sflag [#allocation5], 1
    %14 = vsyncpa %s13, 0
    loop: start=0, step=1, limit=4
    $region2: #{tpu_custom_call.1} parent=1 // loop_pre_header
      _
    $region3: #{tpu_custom_call.1} parent=1 // loop_header
      %s16 = sphi 0, %s20
      %p17 = scmp.ge.s32.totalorder %s16, 4
      %s26 = sphi 0, %s28
      %s29 = sphi 0, %s26
      %s30 = sphi 0, %s29
      %s46 = sphi 0, %s30
      %s50 = sphi 0, %s50
      %s52 = sphi 0, %s50
      %s53 = sphi 0, %s52
      %s67 = sphi 0, %s53
      %s71 = sphi 0, %s71
      %s73 = sphi 0, %s71
      %s74 = sphi 0, %s73
      %s88 = sphi 0, %s74
      %s94 = sphi 0, %s96
      %s97 = sphi 0, %s94
      %s98 = sphi 0, %s97
      %s114 = sphi 0, %s98
    $region4: #{tpu_custom_call.1} parent=1 // loop_header_branch
      %19 = sbr.rel (%p17) target = $region8
    $region5: #{tpu_custom_call.1} parent=1 // loop_body
      %s21 = ssub.s32 %s16, 1
      %s22 = ssub.s32 %s16, 2
      %s23 = sadd.s32 %s16, 1
      %s24 = ssub.s32 %s16, %s23
      %p25 = scmp.eq.s32.totalorder %s24, 0
      %s27 = sadd.s32 %s26, 1
      %s28 = scalar_select %p25, %s26, %s27
      %p31 = pneg %p25
      %p32 = scmp.eq.s32.totalorder %s16, 1
      %p33 = por %p31, %p32
      %p34 = scmp.ne.s32.totalorder %s26, %s29
      %p35 = scmp.eq.s32.totalorder %s16, 0
      %p36 = por %p34, %p35
      %p37 = scmp.ne.s32.totalorder %s26, %s29
      %p38 = scmp.eq.s32.totalorder %s21, 1
      %p39 = por %p37, %p38
      %p40 = scmp.ne.s32.totalorder %s29, %s30
      %p41 = scmp.eq.s32.totalorder %s21, 0
      %p42 = por %p40, %p41
      %p43 = scmp.ne.s32.totalorder %s29, %s30
      %p44 = scmp.eq.s32.totalorder %s22, 1
      %p45 = por %p43, %p44
      %p47 = scmp.ne.s32.totalorder %s30, %s46
      %p48 = scmp.eq.s32.totalorder %s22, 0
      %p49 = por %p47, %p48
      %s51 = sadd.s32 %s50, 1
      %p54 = scmp.eq.s32.totalorder %s16, 1
      %p55 = scmp.ne.s32.totalorder %s50, %s52
      %p56 = scmp.eq.s32.totalorder %s16, 0
      %p57 = por %p55, %p56
      %p58 = scmp.ne.s32.totalorder %s50, %s52
      %p59 = scmp.eq.s32.totalorder %s21, 1
      %p60 = por %p58, %p59
      %p61 = scmp.ne.s32.totalorder %s52, %s53
      %p62 = scmp.eq.s32.totalorder %s21, 0
      %p63 = por %p61, %p62
      %p64 = scmp.ne.s32.totalorder %s52, %s53
      %p65 = scmp.eq.s32.totalorder %s22, 1
      %p66 = por %p64, %p65
      %p68 = scmp.ne.s32.totalorder %s53, %s67
      %p69 = scmp.eq.s32.totalorder %s22, 0
      %p70 = por %p68, %p69
      %s72 = sadd.s32 %s71, 1
      %p75 = scmp.eq.s32.totalorder %s16, 1
      %p76 = scmp.ne.s32.totalorder %s71, %s73
      %p77 = scmp.eq.s32.totalorder %s16, 0
      %p78 = por %p76, %p77
      %p79 = scmp.ne.s32.totalorder %s71, %s73
      %p80 = scmp.eq.s32.totalorder %s21, 1
      %p81 = por %p79, %p80
      %p82 = scmp.ne.s32.totalorder %s73, %s74
      %p83 = scmp.eq.s32.totalorder %s21, 0
      %p84 = por %p82, %p83
      %p85 = scmp.ne.s32.totalorder %s73, %s74
      %p86 = scmp.eq.s32.totalorder %s22, 1
      %p87 = por %p85, %p86
      %p89 = scmp.ne.s32.totalorder %s74, %s88
      %p90 = scmp.eq.s32.totalorder %s22, 0
      %p91 = por %p89, %p90
      %s92 = ssub.s32 %s16, %s23
      %p93 = scmp.eq.s32.totalorder %s92, 0
      %s95 = sadd.s32 %s94, 1
      %s96 = scalar_select %p93, %s94, %s95
      %p99 = pneg %p93
      %p100 = scmp.eq.s32.totalorder %s16, 1
      %p101 = por %p99, %p100
      %p102 = scmp.ne.s32.totalorder %s94, %s97
      %p103 = scmp.eq.s32.totalorder %s16, 0
      %p104 = por %p102, %p103
      %p105 = scmp.ne.s32.totalorder %s94, %s97
      %p106 = scmp.eq.s32.totalorder %s21, 1
      %p107 = por %p105, %p106
      %p108 = scmp.ne.s32.totalorder %s97, %s98
      %p109 = scmp.eq.s32.totalorder %s21, 0
      %p110 = por %p108, %p109
      %p111 = scmp.ne.s32.totalorder %s97, %s98
      %p112 = scmp.eq.s32.totalorder %s22, 1
      %p113 = por %p111, %p112
      %p115 = scmp.ne.s32.totalorder %s98, %s114
      %p116 = scmp.eq.s32.totalorder %s22, 0
      %p117 = por %p115, %p116
      %p118 = scmp.le.s32.totalorder 1, %s16
      %p119 = scmp.lt.s32.totalorder %s16, 3
      %p120 = pnand %p118, %p119
      %p121 = pneg %p120
      // Predicated region
      $region9: #{tpu_custom_call.1} parent=5 // pred_check
        _
      $region10: #{tpu_custom_call.1} parent=5 // pred_check_branch
        %123 = sbr.rel (%p120) target = $region12
      $region11: #{tpu_custom_call.1} parent=5 // pred_region
        %s124 = ssub.s32 %s16, 1
        // Predicated region
        $region13: #{tpu_custom_call.1} parent=11 // pred_check
          %p125 = pneg %p63
        $region14: #{tpu_custom_call.1} parent=11 // pred_check_branch
          %127 = sbr.rel (%p125) target = $region16
        $region15: #{tpu_custom_call.1} parent=11 // pred_region
          %s129 = ssub.s32 6144, 6144
          %130 = vsyncadd [#allocation7], %s129
          %s131 = sshll.u32 [#allocation6], 4
          %s132 = int_to_ptr.vmem [resolvable:$true] %s131
          %137 = dma.hbm_to_vmem [thread:$0]  %s1, 6144, %s132, [#allocation7], 128, 128, 8
        $region16: #{tpu_custom_call.1} parent=11 // pred_fallthru
          _
        // Predicated region
        $region17: #{tpu_custom_call.1} parent=11 // pred_check
          %p138 = pneg %p84
        $region18: #{tpu_custom_call.1} parent=11 // pred_check_branch
          %140 = sbr.rel (%p138) target = $region20
        $region19: #{tpu_custom_call.1} parent=11 // pred_region
          _
        $region20: #{tpu_custom_call.1} parent=11 // pred_fallthru
          _
      $region12: #{tpu_custom_call.1} parent=5 // pred_fallthru
        _
      %p141 = scmp.lt.s32.totalorder %s16, 2
      // Predicated region
      $region21: #{tpu_custom_call.1} parent=5 // pred_check
        %p142 = pneg %p141
      $region22: #{tpu_custom_call.1} parent=5 // pred_check_branch
        %144 = sbr.rel (%p142) target = $region24
      $region23: #{tpu_custom_call.1} parent=5 // pred_region
        // Predicated region
        $region25: #{tpu_custom_call.1} parent=23 // pred_check
          %p145 = pneg %p36
        $region26: #{tpu_custom_call.1} parent=23 // pred_check_branch
          %147 = sbr.rel (%p145) target = $region28
        $region27: #{tpu_custom_call.1} parent=23 // pred_region
          %s148 = sand.u32 %s26, 1
          %s149 = scalar_lea.sflag [#allocation4], %s148
          %s150 = sand.u32 %s26, 1
          %s151 = smul.addr %s150, 8
          %s152 = scalar_lea.vmem [#allocation3], %s151
          %s154 = ssub.s32 128, 128
          %155 = vsyncadd %s149, %s154
          %s156 = smul.addr %s16, 2
          %s157 = smul.addr %s156, 64
          %s158 = scalar_lea.hbm %s0, %s157
          %s159 = sshll.u32 %s152, 4
          %s160 = int_to_ptr.vmem [resolvable:$true] %s159
          %165 = dma.hbm_to_vmem [thread:$0]  %s158, 128, %s160, %s149, 64, 64, 4
        $region28: #{tpu_custom_call.1} parent=23 // pred_fallthru
          _
      $region24: #{tpu_custom_call.1} parent=5 // pred_fallthru
        _
      %p166 = scmp.le.s32.totalorder 1, %s16
      %p167 = scmp.lt.s32.totalorder %s16, 3
      %p168 = pnand %p166, %p167
      %p169 = pneg %p168
      // Predicated region
      $region29: #{tpu_custom_call.1} parent=5 // pred_check
        _
      $region30: #{tpu_custom_call.1} parent=5 // pred_check_branch
        %171 = sbr.rel (%p168) target = $region32
      $region31: #{tpu_custom_call.1} parent=5 // pred_region
        %s172 = ssub.s32 %s16, 1
        %s173 = sand.u32 %s29, 1
        %s174 = scalar_lea.sflag [#allocation4], %s173
        %s175 = sand.u32 %s29, 1
        %s176 = smul.addr %s175, 8
        %s177 = scalar_lea.vmem [#allocation3], %s176
        // Predicated region
        $region33: #{tpu_custom_call.1} parent=31 // pred_check
          %p178 = pneg %p42
        $region34: #{tpu_custom_call.1} parent=31 // pred_check_branch
          %180 = sbr.rel (%p178) target = $region36
        $region35: #{tpu_custom_call.1} parent=31 // pred_region
          %181 = dma.done %s174, 128
        $region36: #{tpu_custom_call.1} parent=31 // pred_fallthru
          _
        // Predicated region
        $region37: #{tpu_custom_call.1} parent=31 // pred_check
          %p182 = pneg %p63
        $region38: #{tpu_custom_call.1} parent=31 // pred_check_branch
          %184 = sbr.rel (%p182) target = $region40
        $region39: #{tpu_custom_call.1} parent=31 // pred_region
          %185 = dma.done [#allocation7], 6144
        $region40: #{tpu_custom_call.1} parent=31 // pred_fallthru
          _
        %s186 = sand.u32 %s29, 1
        %s187 = scalar_lea.sflag [#allocation4], %s186
        %s188 = sand.u32 %s29, 1
        %s189 = smul.addr %s188, 8
        %s190 = scalar_lea.vmem [#allocation3], %s189
        %p191 = pneg %p42
        %p192 = pneg %p39
        %p193 = pneg %p63
        %p194 = pneg %p60
        %p195 = pneg %p84
        %p196 = pneg %p81
        %p197 = pneg %p110
        %p198 = pneg %p107
        %s199 = sand.u32 %s97, 1
        %s200 = scalar_lea.sflag [#allocation5], %s199
        %s201 = sand.u32 %s97, 1
        %s202 = smul.addr %s201, 32
        %s203 = scalar_lea.vmem [#allocation8], %s202
        %vm205 = vcmask 257024
        %206 = vst.msk [vmem:[#allocation2] sm:$0xf] %vm205, 0
        %vm207 = vcmask 253952
        %208 = vst.msk [vmem:[#allocation2 + $0x4] sm:$0x1] %vm207, 0
        %209 = vst.msk [vmem:[#allocation2 + $0x8] sm:$0xf] %vm205, 0
        %210 = vst.msk [vmem:[#allocation2 + $0xc] sm:$0x1] %vm207, 0
        %211 = vst.msk [vmem:[#allocation2 + $0x10] sm:$0xf] %vm205, 0
        %212 = vst.msk [vmem:[#allocation2 + $0x14] sm:$0x1] %vm207, 0
        %213 = vst.msk [vmem:[#allocation2 + $0x18] sm:$0xf] %vm205, 0
        %214 = vst.msk [vmem:[#allocation2 + $0x1c] sm:$0x1] %vm207, 0
        %v215 = vld [vmem:[%s177] sm:$0xf]
        %v216 = vld [vmem:[%s177 + $0x4] sm:$0xf]
        %v218 = vshrl.u32 %v215, 16
        %v220 = vrot.slane %v218, 7
        %v221 = vshll.u32 %v215, 16
        %v223 = vor.u32 %v220, %v221
        %v224 = vrot.slane %v220, 4
        %v226 = vshrl.u32 %v216, 16
        %v228 = vrot.slane %v226, 7
        %v229 = vshll.u32 %v216, 16
        %v231 = vor.u32 %v228, %v229
        %v232 = vrot.slane %v228, 4
        %s237 = scalar_lea.vmem [#allocation2], 8
        %vm238 = vcmask 257024
        %vm239 = vsmask.f32 7938
        %vm240 = vmand %vm238, %vm239
        %v241 = vld [vmem:[%s237] sm:$0xf]
        %v242 = vsel %vm240, %v223, %v241
        %243 = vst [vmem:[%s237] sm:$0xf] %v242
        %vm244 = vcmask 253952
        %vm245 = vsmask.f32 256
        %vm246 = vmand %vm244, %vm245
        %v247 = vld [vmem:[%s237 + $0x4] sm:$0x1]
        %v248 = vsel %vm246, %v224, %v247
        %249 = vst [vmem:[%s237 + $0x4] sm:$0x1] %v248
        %v250 = vld [vmem:[%s237 + $0x8] sm:$0xf]
        %v251 = vsel %vm240, %v231, %v250
        %252 = vst [vmem:[%s237 + $0x8] sm:$0xf] %v251
        %v253 = vld [vmem:[%s237 + $0xc] sm:$0x1]
        %v254 = vsel %vm246, %v232, %v253
        %255 = vst [vmem:[%s237 + $0xc] sm:$0x1] %v254
        %v256 = vld [vmem:[%s2] sm:$0x3]
        %v257 = vld [vmem:[#allocation2] sm:$0xf]
        %v258 = vld [vmem:[#allocation2 + $0x8] sm:$0xf]
        %v259 = vld [vmem:[#allocation6] sm:$0xff]
        %v260 = vld [vmem:[#allocation6 + $0x8] sm:$0xff]
        %v261 = vld [vmem:[#allocation6 + $0x10] sm:$0xff]
        %v262 = vld [vmem:[#allocation6 + $0x18] sm:$0xff]
        %v263 = vld [vmem:[#allocation2 + $0x4] sm:$0x1]
        %v264 = vld [vmem:[#allocation2 + $0xc] sm:$0x1]
        %vm265 = vsmask.f32 3328
        %vm266 = vsmask.f32 7440
        %vm267 = vmor %vm265, %vm266
        %v269 = vshrl.u32 %v257, 16
        %v271 = vrot.slane %v269, 4
        %v272 = vshll.u32 %v257, 16
        %v274 = vrot.slane %v272, 5
        %v275 = vor.u32 %v271, %v274
        %v276 = vrot.slane %v275, 4
        %v278 = vshll.u32 %v263, 16
        %v280 = vrot.slane %v278, 5
        %v281 = vsel %vm267, %v276, %v280
        %v283 = vshrl.u32 %v258, 16
        %v285 = vrot.slane %v283, 4
        %v286 = vshll.u32 %v258, 16
        %v288 = vrot.slane %v286, 5
        %v289 = vor.u32 %v285, %v288
        %v290 = vrot.slane %v289, 4
        %v292 = vshll.u32 %v264, 16
        %v294 = vrot.slane %v292, 5
        %v295 = vsel %vm267, %v290, %v294
        %s296 = scalar_lea.vmem [#allocation6], 32
        %v297 = vld [vmem:[%s296] sm:$0xff]
        %v298 = vld [vmem:[%s296 + $0x8] sm:$0xff]
        %v299 = vld [vmem:[%s296 + $0x10] sm:$0xff]
        %v300 = vld [vmem:[%s296 + $0x18] sm:$0xff]
        %v301 = vunpack.c.l.b16 %v281
        %v302 = vunpack.c.l.b16 %v295
        %v303 = vpack.c.b16 %v302, %v301
        %v308 = vunpack.c.l.b16 %v297
        %v309 = vunpack.c.h.b16 %v297
        %v310 = vunpack.c.l.b16 %v298
        %v311 = vunpack.c.h.b16 %v298
        %v312 = vunpack.c.l.b16 %v299
        %v313 = vunpack.c.h.b16 %v299
        %v314 = vunpack.c.l.b16 %v300
        %v315 = vunpack.c.h.b16 %v300
        %v316 = vpack.c.b16 %v310, %v308
        %v317 = vpack.c.b16 %v311, %v309
        %v318 = vpack.c.b16 %v314, %v312
        %v319 = vpack.c.b16 %v315, %v313
        %vm324 = vcmask 261120
        %v326 = vsel %vm324, %v303, 0
        %328 = vmatprep.subr.bf16.mxu0 0
        %329 = vmatpush1.bf16.msra.mxu0 0
        %330 = vmatprep.subr.bf16.mxu0 0
        %331 = vmatpush1.bf16.msra.mxu0 0
        %332 = vmatprep.subr.bf16.mxu0 0
        %333 = vmatpush1.bf16.msra.mxu0 0
        %334 = vmatprep.subr.bf16.mxu0 0
        %335 = vmatpush1.bf16.msra.mxu0 0
        %336 = vmatprep.subr.bf16.mxu0 0
        %337 = vmatpush1.bf16.msra.mxu0 0
        %338 = vmatprep.subr.bf16.mxu0 0
        %339 = vmatpush1.bf16.msra.mxu0 0
        %340 = vmatprep.subr.bf16.mxu0 %v319
        %341 = vmatpush1.bf16.msra.mxu0 %v318
        %342 = vmatprep.subr.bf16.mxu0 %v317
        %343 = vmatpush1.bf16.msra.mxu0 %v316
        %344 = vmatprep.subr.bf16.mxu0 0
        %345 = vmatpush2.bf16.msra.mxu0 0
        %346 = vmatprep.subr.bf16.mxu0 0
        %347 = vmatpush2.bf16.msra.mxu0 0
        %348 = vmatprep.subr.bf16.mxu0 0
        %349 = vmatpush2.bf16.msra.mxu0 0
        %350 = vmatprep.subr.bf16.mxu0 0
        %351 = vmatpush2.bf16.msra.mxu0 0
        %352 = vmatprep.subr.bf16.mxu0 0
        %353 = vmatpush2.bf16.msra.mxu0 0
        %354 = vmatprep.subr.bf16.mxu0 0
        %355 = vmatpush2.bf16.msra.mxu0 0
        %356 = vmatprep.subr.bf16.mxu0 0
        %357 = vmatpush2.bf16.msra.mxu0 0
        %358 = vmatprep.subr.bf16.mxu0 0
        %359 = vmatpush2.bf16.msra.mxu0 0
        %360 = vmatprep.mubr.bf16.mxu0 0
        %361 = vmatmul.mubr.bf16.gmra.mxu0 %v326
        %v362 = vpop.f32.mrf.mxu0
        %v363 = vadd.f32 0.0, %v362
        %v364 = vpop.f32.mrf.mxu0
        %v365 = vadd.f32 0.0, %v364
        %v366 = vpop.f32.mrf.mxu0
        %v367 = vadd.f32 0.0, %v366
        %v368 = vpop.f32.mrf.mxu0
        %v369 = vadd.f32 0.0, %v368
        %370 = vdwg.mxu0
        %v373 = vunpack.c.l.b16 %v257
        %v374 = vunpack.c.l.b16 %v258
        %v375 = vpack.c.b16 %v374, %v373
        %v380 = vunpack.c.l.b16 %v259
        %v381 = vunpack.c.h.b16 %v259
        %v382 = vunpack.c.l.b16 %v260
        %v383 = vunpack.c.h.b16 %v260
        %v384 = vunpack.c.l.b16 %v261
        %v385 = vunpack.c.h.b16 %v261
        %v386 = vunpack.c.l.b16 %v262
        %v387 = vunpack.c.h.b16 %v262
        %v388 = vpack.c.b16 %v382, %v380
        %v389 = vpack.c.b16 %v383, %v381
        %v390 = vpack.c.b16 %v386, %v384
        %v391 = vpack.c.b16 %v387, %v385
        %v397 = vsel %vm324, %v375, 0
        %399 = vmatprep.subr.bf16.mxu0 0
        %400 = vmatpush1.bf16.msra.mxu0 0
        %401 = vmatprep.subr.bf16.mxu0 0
        %402 = vmatpush1.bf16.msra.mxu0 0
        %403 = vmatprep.subr.bf16.mxu0 0
        %404 = vmatpush1.bf16.msra.mxu0 0
        %405 = vmatprep.subr.bf16.mxu0 0
        %406 = vmatpush1.bf16.msra.mxu0 0
        %407 = vmatprep.subr.bf16.mxu0 0
        %408 = vmatpush1.bf16.msra.mxu0 0
        %409 = vmatprep.subr.bf16.mxu0 0
        %410 = vmatpush1.bf16.msra.mxu0 0
        %411 = vmatprep.subr.bf16.mxu0 %v391
        %412 = vmatpush1.bf16.msra.mxu0 %v390
        %413 = vmatprep.subr.bf16.mxu0 %v389
        %414 = vmatpush1.bf16.msra.mxu0 %v388
        %415 = vmatprep.subr.bf16.mxu0 0
        %416 = vmatpush2.bf16.msra.mxu0 0
        %417 = vmatprep.subr.bf16.mxu0 0
        %418 = vmatpush2.bf16.msra.mxu0 0
        %419 = vmatprep.subr.bf16.mxu0 0
        %420 = vmatpush2.bf16.msra.mxu0 0
        %421 = vmatprep.subr.bf16.mxu0 0
        %422 = vmatpush2.bf16.msra.mxu0 0
        %423 = vmatprep.subr.bf16.mxu0 0
        %424 = vmatpush2.bf16.msra.mxu0 0
        %425 = vmatprep.subr.bf16.mxu0 0
        %426 = vmatpush2.bf16.msra.mxu0 0
        %427 = vmatprep.subr.bf16.mxu0 0
        %428 = vmatpush2.bf16.msra.mxu0 0
        %429 = vmatprep.subr.bf16.mxu0 0
        %430 = vmatpush2.bf16.msra.mxu0 0
        %431 = vmatprep.mubr.bf16.mxu0 0
        %432 = vmatmul.mubr.bf16.gmra.mxu0 %v397
        %v433 = vpop.f32.mrf.mxu0
        %v434 = vadd.f32 %v363, %v433
        %v435 = vpop.f32.mrf.mxu0
        %v436 = vadd.f32 %v365, %v435
        %v437 = vpop.f32.mrf.mxu0
        %v438 = vadd.f32 %v367, %v437
        %v439 = vpop.f32.mrf.mxu0
        %v440 = vadd.f32 %v369, %v439
        %441 = vdwg.mxu0
        %v442 = vld [vmem:[%s237] sm:$0xf]
        %v443 = vld [vmem:[%s237 + $0x8] sm:$0xf]
        %s444 = scalar_lea.vmem [#allocation6], 64
        %v445 = vld [vmem:[%s444] sm:$0xff]
        %v446 = vld [vmem:[%s444 + $0x8] sm:$0xff]
        %v447 = vld [vmem:[%s444 + $0x10] sm:$0xff]
        %v448 = vld [vmem:[%s444 + $0x18] sm:$0xff]
        %v451 = vunpack.c.l.b16 %v442
        %v452 = vunpack.c.l.b16 %v443
        %v453 = vpack.c.b16 %v452, %v451
        %v458 = vunpack.c.l.b16 %v445
        %v459 = vunpack.c.h.b16 %v445
        %v460 = vunpack.c.l.b16 %v446
        %v461 = vunpack.c.h.b16 %v446
        %v462 = vunpack.c.l.b16 %v447
        %v463 = vunpack.c.h.b16 %v447
        %v464 = vunpack.c.l.b16 %v448
        %v465 = vunpack.c.h.b16 %v448
        %v466 = vpack.c.b16 %v460, %v458
        %v467 = vpack.c.b16 %v461, %v459
        %v468 = vpack.c.b16 %v464, %v462
        %v469 = vpack.c.b16 %v465, %v463
        %v475 = vsel %vm324, %v453, 0
        %477 = vmatprep.subr.bf16.mxu0 0
        %478 = vmatpush1.bf16.msra.mxu0 0
        %479 = vmatprep.subr.bf16.mxu0 0
        %480 = vmatpush1.bf16.msra.mxu0 0
        %481 = vmatprep.subr.bf16.mxu0 0
        %482 = vmatpush1.bf16.msra.mxu0 0
        %483 = vmatprep.subr.bf16.mxu0 0
        %484 = vmatpush1.bf16.msra.mxu0 0
        %485 = vmatprep.subr.bf16.mxu0 0
        %486 = vmatpush1.bf16.msra.mxu0 0
        %487 = vmatprep.subr.bf16.mxu0 0
        %488 = vmatpush1.bf16.msra.mxu0 0
        %489 = vmatprep.subr.bf16.mxu0 %v469
        %490 = vmatpush1.bf16.msra.mxu0 %v468
        %491 = vmatprep.subr.bf16.mxu0 %v467
        %492 = vmatpush1.bf16.msra.mxu0 %v466
        %493 = vmatprep.subr.bf16.mxu0 0
        %494 = vmatpush2.bf16.msra.mxu0 0
        %495 = vmatprep.subr.bf16.mxu0 0
        %496 = vmatpush2.bf16.msra.mxu0 0
        %497 = vmatprep.subr.bf16.mxu0 0
        %498 = vmatpush2.bf16.msra.mxu0 0
        %499 = vmatprep.subr.bf16.mxu0 0
        %500 = vmatpush2.bf16.msra.mxu0 0
        %501 = vmatprep.subr.bf16.mxu0 0
        %502 = vmatpush2.bf16.msra.mxu0 0
        %503 = vmatprep.subr.bf16.mxu0 0
        %504 = vmatpush2.bf16.msra.mxu0 0
        %505 = vmatprep.subr.bf16.mxu0 0
        %506 = vmatpush2.bf16.msra.mxu0 0
        %507 = vmatprep.subr.bf16.mxu0 0
        %508 = vmatpush2.bf16.msra.mxu0 0
        %509 = vmatprep.mubr.bf16.mxu0 0
        %510 = vmatmul.mubr.bf16.gmra.mxu0 %v475
        %v511 = vpop.f32.mrf.mxu0
        %v512 = vadd.f32 0.0, %v511
        %v513 = vpop.f32.mrf.mxu0
        %v514 = vadd.f32 0.0, %v513
        %v515 = vpop.f32.mrf.mxu0
        %v516 = vadd.f32 0.0, %v515
        %v517 = vpop.f32.mrf.mxu0
        %v518 = vadd.f32 0.0, %v517
        %519 = vdwg.mxu0
        %v520 = vadd.f32 %v434, %v512
        %v521 = vadd.f32 %v436, %v514
        %v522 = vadd.f32 %v438, %v516
        %v523 = vadd.f32 %v440, %v518
        %v524 = vld [vmem:[%s237] sm:$0xf]
        %v525 = vld [vmem:[%s237 + $0x4] sm:$0x1]
        %v526 = vld [vmem:[%s237 + $0x8] sm:$0xf]
        %v527 = vld [vmem:[%s237 + $0xc] sm:$0x1]
        %v529 = vshrl.u32 %v524, 16
        %v531 = vrot.slane %v529, 4
        %v532 = vshll.u32 %v524, 16
        %v534 = vrot.slane %v532, 5
        %v535 = vor.u32 %v531, %v534
        %v536 = vrot.slane %v535, 4
        %v538 = vshll.u32 %v525, 16
        %v540 = vrot.slane %v538, 5
        %v541 = vsel %vm267, %v536, %v540
        %v543 = vshrl.u32 %v526, 16
        %v545 = vrot.slane %v543, 4
        %v546 = vshll.u32 %v526, 16
        %v548 = vrot.slane %v546, 5
        %v549 = vor.u32 %v545, %v548
        %v550 = vrot.slane %v549, 4
        %v552 = vshll.u32 %v527, 16
        %v554 = vrot.slane %v552, 5
        %v555 = vsel %vm267, %v550, %v554
        %s556 = scalar_lea.vmem [#allocation6], 96
        %v557 = vld [vmem:[%s556] sm:$0xff]
        %v558 = vld [vmem:[%s556 + $0x8] sm:$0xff]
        %v559 = vld [vmem:[%s556 + $0x10] sm:$0xff]
        %v560 = vld [vmem:[%s556 + $0x18] sm:$0xff]
        %v561 = vunpack.c.l.b16 %v541
        %v562 = vunpack.c.l.b16 %v555
        %v563 = vpack.c.b16 %v562, %v561
        %v568 = vunpack.c.l.b16 %v557
        %v569 = vunpack.c.h.b16 %v557
        %v570 = vunpack.c.l.b16 %v558
        %v571 = vunpack.c.h.b16 %v558
        %v572 = vunpack.c.l.b16 %v559
        %v573 = vunpack.c.h.b16 %v559
        %v574 = vunpack.c.l.b16 %v560
        %v575 = vunpack.c.h.b16 %v560
        %v576 = vpack.c.b16 %v570, %v568
        %v577 = vpack.c.b16 %v571, %v569
        %v578 = vpack.c.b16 %v574, %v572
        %v579 = vpack.c.b16 %v575, %v573
        %v585 = vsel %vm324, %v563, 0
        %587 = vmatprep.subr.bf16.mxu0 0
        %588 = vmatpush1.bf16.msra.mxu0 0
        %589 = vmatprep.subr.bf16.mxu0 0
        %590 = vmatpush1.bf16.msra.mxu0 0
        %591 = vmatprep.subr.bf16.mxu0 0
        %592 = vmatpush1.bf16.msra.mxu0 0
        %593 = vmatprep.subr.bf16.mxu0 0
        %594 = vmatpush1.bf16.msra.mxu0 0
        %595 = vmatprep.subr.bf16.mxu0 0
        %596 = vmatpush1.bf16.msra.mxu0 0
        %597 = vmatprep.subr.bf16.mxu0 0
        %598 = vmatpush1.bf16.msra.mxu0 0
        %599 = vmatprep.subr.bf16.mxu0 %v579
        %600 = vmatpush1.bf16.msra.mxu0 %v578
        %601 = vmatprep.subr.bf16.mxu0 %v577
        %602 = vmatpush1.bf16.msra.mxu0 %v576
        %603 = vmatprep.subr.bf16.mxu0 0
        %604 = vmatpush2.bf16.msra.mxu0 0
        %605 = vmatprep.subr.bf16.mxu0 0
        %606 = vmatpush2.bf16.msra.mxu0 0
        %607 = vmatprep.subr.bf16.mxu0 0
        %608 = vmatpush2.bf16.msra.mxu0 0
        %609 = vmatprep.subr.bf16.mxu0 0
        %610 = vmatpush2.bf16.msra.mxu0 0
        %611 = vmatprep.subr.bf16.mxu0 0
        %612 = vmatpush2.bf16.msra.mxu0 0
        %613 = vmatprep.subr.bf16.mxu0 0
        %614 = vmatpush2.bf16.msra.mxu0 0
        %615 = vmatprep.subr.bf16.mxu0 0
        %616 = vmatpush2.bf16.msra.mxu0 0
        %617 = vmatprep.subr.bf16.mxu0 0
        %618 = vmatpush2.bf16.msra.mxu0 0
        %619 = vmatprep.mubr.bf16.mxu0 0
        %620 = vmatmul.mubr.bf16.gmra.mxu0 %v585
        %v621 = vpop.f32.mrf.mxu0
        %v622 = vadd.f32 0.0, %v621
        %v623 = vpop.f32.mrf.mxu0
        %v624 = vadd.f32 0.0, %v623
        %v625 = vpop.f32.mrf.mxu0
        %v626 = vadd.f32 0.0, %v625
        %v627 = vpop.f32.mrf.mxu0
        %v628 = vadd.f32 0.0, %v627
        %629 = vdwg.mxu0
        %v630 = vadd.f32 %v520, %v622
        %v631 = vadd.f32 %v521, %v624
        %v632 = vadd.f32 %v522, %v626
        %v633 = vadd.f32 %v523, %v628
        %s634 = scalar_lea.vmem [#allocation2], 16
        %v635 = vld [vmem:[%s634] sm:$0xf]
        %v636 = vld [vmem:[%s634 + $0x8] sm:$0xf]
        %s637 = scalar_lea.vmem [#allocation6], 128
        %v638 = vld [vmem:[%s637] sm:$0xff]
        %v639 = vld [vmem:[%s637 + $0x8] sm:$0xff]
        %v640 = vld [vmem:[%s637 + $0x10] sm:$0xff]
        %v641 = vld [vmem:[%s637 + $0x18] sm:$0xff]
        %v644 = vunpack.c.l.b16 %v635
        %v645 = vunpack.c.l.b16 %v636
        %v646 = vpack.c.b16 %v645, %v644
        %v651 = vunpack.c.l.b16 %v638
        %v652 = vunpack.c.h.b16 %v638
        %v653 = vunpack.c.l.b16 %v639
        %v654 = vunpack.c.h.b16 %v639
        %v655 = vunpack.c.l.b16 %v640
        %v656 = vunpack.c.h.b16 %v640
        %v657 = vunpack.c.l.b16 %v641
        %v658 = vunpack.c.h.b16 %v641
        %v659 = vpack.c.b16 %v653, %v651
        %v660 = vpack.c.b16 %v654, %v652
        %v661 = vpack.c.b16 %v657, %v655
        %v662 = vpack.c.b16 %v658, %v656
        %v668 = vsel %vm324, %v646, 0
        %670 = vmatprep.subr.bf16.mxu0 0
        %671 = vmatpush1.bf16.msra.mxu0 0
        %672 = vmatprep.subr.bf16.mxu0 0
        %673 = vmatpush1.bf16.msra.mxu0 0
        %674 = vmatprep.subr.bf16.mxu0 0
        %675 = vmatpush1.bf16.msra.mxu0 0
        %676 = vmatprep.subr.bf16.mxu0 0
        %677 = vmatpush1.bf16.msra.mxu0 0
        %678 = vmatprep.subr.bf16.mxu0 0
        %679 = vmatpush1.bf16.msra.mxu0 0
        %680 = vmatprep.subr.bf16.mxu0 0
        %681 = vmatpush1.bf16.msra.mxu0 0
        %682 = vmatprep.subr.bf16.mxu0 %v662
        %683 = vmatpush1.bf16.msra.mxu0 %v661
        %684 = vmatprep.subr.bf16.mxu0 %v660
        %685 = vmatpush1.bf16.msra.mxu0 %v659
        %686 = vmatprep.subr.bf16.mxu0 0
        %687 = vmatpush2.bf16.msra.mxu0 0
        %688 = vmatprep.subr.bf16.mxu0 0
        %689 = vmatpush2.bf16.msra.mxu0 0
        %690 = vmatprep.subr.bf16.mxu0 0
        %691 = vmatpush2.bf16.msra.mxu0 0
        %692 = vmatprep.subr.bf16.mxu0 0
        %693 = vmatpush2.bf16.msra.mxu0 0
        %694 = vmatprep.subr.bf16.mxu0 0
        %695 = vmatpush2.bf16.msra.mxu0 0
        %696 = vmatprep.subr.bf16.mxu0 0
        %697 = vmatpush2.bf16.msra.mxu0 0
        %698 = vmatprep.subr.bf16.mxu0 0
        %699 = vmatpush2.bf16.msra.mxu0 0
        %700 = vmatprep.subr.bf16.mxu0 0
        %701 = vmatpush2.bf16.msra.mxu0 0
        %702 = vmatprep.mubr.bf16.mxu0 0
        %703 = vmatmul.mubr.bf16.gmra.mxu0 %v668
        %v704 = vpop.f32.mrf.mxu0
        %v705 = vadd.f32 0.0, %v704
        %v706 = vpop.f32.mrf.mxu0
        %v707 = vadd.f32 0.0, %v706
        %v708 = vpop.f32.mrf.mxu0
        %v709 = vadd.f32 0.0, %v708
        %v710 = vpop.f32.mrf.mxu0
        %v711 = vadd.f32 0.0, %v710
        %712 = vdwg.mxu0
        %v713 = vadd.f32 %v630, %v705
        %v714 = vadd.f32 %v631, %v707
        %v715 = vadd.f32 %v632, %v709
        %v716 = vadd.f32 %v633, %v711
        %v717 = vld [vmem:[%s634] sm:$0xf]
        %v718 = vld [vmem:[%s634 + $0x4] sm:$0x1]
        %v719 = vld [vmem:[%s634 + $0x8] sm:$0xf]
        %v720 = vld [vmem:[%s634 + $0xc] sm:$0x1]
        %v722 = vshrl.u32 %v717, 16
        %v724 = vrot.slane %v722, 4
        %v725 = vshll.u32 %v717, 16
        %v727 = vrot.slane %v725, 5
        %v728 = vor.u32 %v724, %v727
        %v729 = vrot.slane %v728, 4
        %v731 = vshll.u32 %v718, 16
        %v733 = vrot.slane %v731, 5
        %v734 = vsel %vm267, %v729, %v733
        %v736 = vshrl.u32 %v719, 16
        %v738 = vrot.slane %v736, 4
        %v739 = vshll.u32 %v719, 16
        %v741 = vrot.slane %v739, 5
        %v742 = vor.u32 %v738, %v741
        %v743 = vrot.slane %v742, 4
        %v745 = vshll.u32 %v720, 16
        %v747 = vrot.slane %v745, 5
        %v748 = vsel %vm267, %v743, %v747
        %s749 = scalar_lea.vmem [#allocation6], 160
        %v750 = vld [vmem:[%s749] sm:$0xff]
        %v751 = vld [vmem:[%s749 + $0x8] sm:$0xff]
        %v752 = vld [vmem:[%s749 + $0x10] sm:$0xff]
        %v753 = vld [vmem:[%s749 + $0x18] sm:$0xff]
        %v754 = vunpack.c.l.b16 %v734
        %v755 = vunpack.c.l.b16 %v748
        %v756 = vpack.c.b16 %v755, %v754
        %v761 = vunpack.c.l.b16 %v750
        %v762 = vunpack.c.h.b16 %v750
        %v763 = vunpack.c.l.b16 %v751
        %v764 = vunpack.c.h.b16 %v751
        %v765 = vunpack.c.l.b16 %v752
        %v766 = vunpack.c.h.b16 %v752
        %v767 = vunpack.c.l.b16 %v753
        %v768 = vunpack.c.h.b16 %v753
        %v769 = vpack.c.b16 %v763, %v761
        %v770 = vpack.c.b16 %v764, %v762
        %v771 = vpack.c.b16 %v767, %v765
        %v772 = vpack.c.b16 %v768, %v766
        %v778 = vsel %vm324, %v756, 0
        %780 = vmatprep.subr.bf16.mxu0 0
        %781 = vmatpush1.bf16.msra.mxu0 0
        %782 = vmatprep.subr.bf16.mxu0 0
        %783 = vmatpush1.bf16.msra.mxu0 0
        %784 = vmatprep.subr.bf16.mxu0 0
        %785 = vmatpush1.bf16.msra.mxu0 0
        %786 = vmatprep.subr.bf16.mxu0 0
        %787 = vmatpush1.bf16.msra.mxu0 0
        %788 = vmatprep.subr.bf16.mxu0 0
        %789 = vmatpush1.bf16.msra.mxu0 0
        %790 = vmatprep.subr.bf16.mxu0 0
        %791 = vmatpush1.bf16.msra.mxu0 0
        %792 = vmatprep.subr.bf16.mxu0 %v772
        %793 = vmatpush1.bf16.msra.mxu0 %v771
        %794 = vmatprep.subr.bf16.mxu0 %v770
        %795 = vmatpush1.bf16.msra.mxu0 %v769
        %796 = vmatprep.subr.bf16.mxu0 0
        %797 = vmatpush2.bf16.msra.mxu0 0
        %798 = vmatprep.subr.bf16.mxu0 0
        %799 = vmatpush2.bf16.msra.mxu0 0
        %800 = vmatprep.subr.bf16.mxu0 0
        %801 = vmatpush2.bf16.msra.mxu0 0
        %802 = vmatprep.subr.bf16.mxu0 0
        %803 = vmatpush2.bf16.msra.mxu0 0
        %804 = vmatprep.subr.bf16.mxu0 0
        %805 = vmatpush2.bf16.msra.mxu0 0
        %806 = vmatprep.subr.bf16.mxu0 0
        %807 = vmatpush2.bf16.msra.mxu0 0
        %808 = vmatprep.subr.bf16.mxu0 0
        %809 = vmatpush2.bf16.msra.mxu0 0
        %810 = vmatprep.subr.bf16.mxu0 0
        %811 = vmatpush2.bf16.msra.mxu0 0
        %812 = vmatprep.mubr.bf16.mxu0 0
        %813 = vmatmul.mubr.bf16.gmra.mxu0 %v778
        %v814 = vpop.f32.mrf.mxu0
        %v815 = vadd.f32 0.0, %v814
        %v816 = vpop.f32.mrf.mxu0
        %v817 = vadd.f32 0.0, %v816
        %v818 = vpop.f32.mrf.mxu0
        %v819 = vadd.f32 0.0, %v818
        %v820 = vpop.f32.mrf.mxu0
        %v821 = vadd.f32 0.0, %v820
        %822 = vdwg.mxu0
        %v823 = vadd.f32 %v713, %v815
        %v824 = vadd.f32 %v714, %v817
        %v825 = vadd.f32 %v715, %v819
        %v826 = vadd.f32 %v716, %v821
        %v828 = vlaneseq
        %v829 = vshrl.u32 %v828, 7
        %v830 = vsub.s32 0, %v829
        %v831 = vrot.slane %v256, %v830
        %v832 = vlaneseq
        %v833 = vshrl.u32 %v832, 7
        %v834 = vsub.s32 1, %v833
        %v835 = vrot.slane %v256, %v834
        %v838 = vadd.f32 %v823, %v831
        %v839 = vadd.f32 %v824, %v835
        %v840 = vadd.f32 %v825, %v831
        %v841 = vadd.f32 %v826, %v835
        %vm842 = vcmp.gt.f32.partialorder %v838, 0.0
        %vm843 = vcmp.gt.f32.partialorder %v839, 0.0
        %vm844 = vcmp.gt.f32.partialorder %v840, 0.0
        %vm845 = vcmp.gt.f32.partialorder %v841, 0.0
        %v846 = vmul.f32 %v838, 0.2
        %v847 = vmul.f32 %v839, 0.2
        %v848 = vmul.f32 %v840, 0.2
        %v849 = vmul.f32 %v841, 0.2
        %v850 = vsel %vm842, %v838, %v846
        %v851 = vsel %vm843, %v839, %v847
        %v852 = vsel %vm844, %v840, %v848
        %v853 = vsel %vm845, %v841, %v849
        %v854 = vpack.c.bf16 %v850, %v850
        %v855 = vpack.c.bf16 %v851, %v851
        %v856 = vpack.c.bf16 %v852, %v852
        %v857 = vpack.c.bf16 %v853, %v853
        %v862 = vunpack.c.l.b16 %v854
        %v863 = vunpack.c.l.b16 %v855
        %v864 = vunpack.c.l.b16 %v856
        %v865 = vunpack.c.l.b16 %v857
        %v866 = vpack.c.b16 %v863, %v862
        %v867 = vpack.c.b16 %v865, %v864
        %870 = vst [vmem:[%s203] sm:$0xff] %v866
        %871 = vst [vmem:[%s203 + $0x10] sm:$0xff] %v867
        %v872 = vld [vmem:[#allocation2] sm:$0xf]
        %v873 = vld [vmem:[#allocation2 + $0x4] sm:$0x1]
        %v874 = vld [vmem:[#allocation2 + $0x8] sm:$0xf]
        %v875 = vld [vmem:[#allocation2 + $0xc] sm:$0x1]
        %v877 = vshrl.u32 %v872, 16
        %v879 = vrot.slane %v877, 4
        %v880 = vshll.u32 %v872, 16
        %v882 = vrot.slane %v880, 5
        %v883 = vor.u32 %v879, %v882
        %v884 = vrot.slane %v883, 4
        %v886 = vshll.u32 %v873, 16
        %v888 = vrot.slane %v886, 5
        %v889 = vsel %vm267, %v884, %v888
        %v891 = vshrl.u32 %v874, 16
        %v893 = vrot.slane %v891, 4
        %v894 = vshll.u32 %v874, 16
        %v896 = vrot.slane %v894, 5
        %v897 = vor.u32 %v893, %v896
        %v898 = vrot.slane %v897, 4
        %v900 = vshll.u32 %v875, 16
        %v902 = vrot.slane %v900, 5
        %v903 = vsel %vm267, %v898, %v902
        %s904 = scalar_lea.vmem [#allocation6], 192
        %v905 = vld [vmem:[%s904] sm:$0xff]
        %v906 = vld [vmem:[%s904 + $0x8] sm:$0xff]
        %v907 = vld [vmem:[%s904 + $0x10] sm:$0xff]
        %v908 = vld [vmem:[%s904 + $0x18] sm:$0xff]
        %v909 = vld [vmem:[#allocation2] sm:$0xe]
        %v910 = vld [vmem:[#allocation2 + $0x8] sm:$0xe]
        %vm915 = vcmask 1042432
        %vm916 = vcmask 1046532
        %vm917 = vmor %vm915, %vm916
        %v918 = vrot.slane %v909, 5
        %v919 = vrot.slane %v918, 4
        %v920 = vrot.slane %v873, 5
        %v921 = vsel %vm917, %v919, %v920
        %v922 = vrot.slane %v910, 5
        %v923 = vrot.slane %v922, 4
        %v924 = vrot.slane %v875, 5
        %v925 = vsel %vm917, %v923, %v924
        %s926 = scalar_lea.vmem [#allocation6], 224
        %v927 = vld [vmem:[%s926] sm:$0xff]
        %v928 = vld [vmem:[%s926 + $0x8] sm:$0xff]
        %v929 = vld [vmem:[%s926 + $0x10] sm:$0xff]
        %v930 = vld [vmem:[%s926 + $0x18] sm:$0xff]
        %v931 = vunpack.c.l.b16 %v921
        %v932 = vunpack.c.l.b16 %v925
        %v933 = vpack.c.b16 %v932, %v931
        %v938 = vunpack.c.l.b16 %v927
        %v939 = vunpack.c.h.b16 %v927
        %v940 = vunpack.c.l.b16 %v928
        %v941 = vunpack.c.h.b16 %v928
        %v942 = vunpack.c.l.b16 %v929
        %v943 = vunpack.c.h.b16 %v929
        %v944 = vunpack.c.l.b16 %v930
        %v945 = vunpack.c.h.b16 %v930
        %v946 = vpack.c.b16 %v940, %v938
        %v947 = vpack.c.b16 %v941, %v939
        %v948 = vpack.c.b16 %v944, %v942
        %v949 = vpack.c.b16 %v945, %v943
        %v955 = vsel %vm324, %v933, 0
        %957 = vmatprep.subr.bf16.mxu0 0
        %958 = vmatpush1.bf16.msra.mxu0 0
        %959 = vmatprep.subr.bf16.mxu0 0
        %960 = vmatpush1.bf16.msra.mxu0 0
        %961 = vmatprep.subr.bf16.mxu0 0
        %962 = vmatpush1.bf16.msra.mxu0 0
        %963 = vmatprep.subr.bf16.mxu0 0
        %964 = vmatpush1.bf16.msra.mxu0 0
        %965 = vmatprep.subr.bf16.mxu0 0
        %966 = vmatpush1.bf16.msra.mxu0 0
        %967 = vmatprep.subr.bf16.mxu0 0
        %968 = vmatpush1.bf16.msra.mxu0 0
        %969 = vmatprep.subr.bf16.mxu0 %v949
        %970 = vmatpush1.bf16.msra.mxu0 %v948
        %971 = vmatprep.subr.bf16.mxu0 %v947
        %972 = vmatpush1.bf16.msra.mxu0 %v946
        %973 = vmatprep.subr.bf16.mxu0 0
        %974 = vmatpush2.bf16.msra.mxu0 0
        %975 = vmatprep.subr.bf16.mxu0 0
        %976 = vmatpush2.bf16.msra.mxu0 0
        %977 = vmatprep.subr.bf16.mxu0 0
        %978 = vmatpush2.bf16.msra.mxu0 0
        %979 = vmatprep.subr.bf16.mxu0 0
        %980 = vmatpush2.bf16.msra.mxu0 0
        %981 = vmatprep.subr.bf16.mxu0 0
        %982 = vmatpush2.bf16.msra.mxu0 0
        %983 = vmatprep.subr.bf16.mxu0 0
        %984 = vmatpush2.bf16.msra.mxu0 0
        %985 = vmatprep.subr.bf16.mxu0 0
        %986 = vmatpush2.bf16.msra.mxu0 0
        %987 = vmatprep.subr.bf16.mxu0 0
        %988 = vmatpush2.bf16.msra.mxu0 0
        %989 = vmatprep.mubr.bf16.mxu0 0
        %990 = vmatmul.mubr.bf16.gmra.mxu0 %v955
        %v991 = vpop.f32.mrf.mxu0
        %v992 = vadd.f32 0.0, %v991
        %v993 = vpop.f32.mrf.mxu0
        %v994 = vadd.f32 0.0, %v993
        %v995 = vpop.f32.mrf.mxu0
        %v996 = vadd.f32 0.0, %v995
        %v997 = vpop.f32.mrf.mxu0
        %v998 = vadd.f32 0.0, %v997
        %999 = vdwg.mxu0
        %v1000 = vunpack.c.l.b16 %v889
        %v1001 = vunpack.c.l.b16 %v903
        %v1002 = vpack.c.b16 %v1001, %v1000
        %v1007 = vunpack.c.l.b16 %v905
        %v1008 = vunpack.c.h.b16 %v905
        %v1009 = vunpack.c.l.b16 %v906
        %v1010 = vunpack.c.h.b16 %v906
        %v1011 = vunpack.c.l.b16 %v907
        %v1012 = vunpack.c.h.b16 %v907
        %v1013 = vunpack.c.l.b16 %v908
        %v1014 = vunpack.c.h.b16 %v908
        %v1015 = vpack.c.b16 %v1009, %v1007
        %v1016 = vpack.c.b16 %v1010, %v1008
        %v1017 = vpack.c.b16 %v1013, %v1011
        %v1018 = vpack.c.b16 %v1014, %v1012
        %v1024 = vsel %vm324, %v1002, 0
        %1026 = vmatprep.subr.bf16.mxu0 0
        %1027 = vmatpush1.bf16.msra.mxu0 0
        %1028 = vmatprep.subr.bf16.mxu0 0
        %1029 = vmatpush1.bf16.msra.mxu0 0
        %1030 = vmatprep.subr.bf16.mxu0 0
        %1031 = vmatpush1.bf16.msra.mxu0 0
        %1032 = vmatprep.subr.bf16.mxu0 0
        %1033 = vmatpush1.bf16.msra.mxu0 0
        %1034 = vmatprep.subr.bf16.mxu0 0
        %1035 = vmatpush1.bf16.msra.mxu0 0
        %1036 = vmatprep.subr.bf16.mxu0 0
        %1037 = vmatpush1.bf16.msra.mxu0 0
        %1038 = vmatprep.subr.bf16.mxu0 %v1018
        %1039 = vmatpush1.bf16.msra.mxu0 %v1017
        %1040 = vmatprep.subr.bf16.mxu0 %v1016
        %1041 = vmatpush1.bf16.msra.mxu0 %v1015
        %1042 = vmatprep.subr.bf16.mxu0 0
        %1043 = vmatpush2.bf16.msra.mxu0 0
        %1044 = vmatprep.subr.bf16.mxu0 0
        %1045 = vmatpush2.bf16.msra.mxu0 0
        %1046 = vmatprep.subr.bf16.mxu0 0
        %1047 = vmatpush2.bf16.msra.mxu0 0
        %1048 = vmatprep.subr.bf16.mxu0 0
        %1049 = vmatpush2.bf16.msra.mxu0 0
        %1050 = vmatprep.subr.bf16.mxu0 0
        %1051 = vmatpush2.bf16.msra.mxu0 0
        %1052 = vmatprep.subr.bf16.mxu0 0
        %1053 = vmatpush2.bf16.msra.mxu0 0
        %1054 = vmatprep.subr.bf16.mxu0 0
        %1055 = vmatpush2.bf16.msra.mxu0 0
        %1056 = vmatprep.subr.bf16.mxu0 0
        %1057 = vmatpush2.bf16.msra.mxu0 0
        %1058 = vmatprep.mubr.bf16.mxu0 0
        %1059 = vmatmul.mubr.bf16.gmra.mxu0 %v1024
        %v1060 = vpop.f32.mrf.mxu0
        %v1061 = vadd.f32 %v992, %v1060
        %v1062 = vpop.f32.mrf.mxu0
        %v1063 = vadd.f32 %v994, %v1062
        %v1064 = vpop.f32.mrf.mxu0
        %v1065 = vadd.f32 %v996, %v1064
        %v1066 = vpop.f32.mrf.mxu0
        %v1067 = vadd.f32 %v998, %v1066
        %1068 = vdwg.mxu0
        %v1069 = vld [vmem:[%s237] sm:$0xf]
        %v1070 = vld [vmem:[%s237 + $0x4] sm:$0x1]
        %v1071 = vld [vmem:[%s237 + $0x8] sm:$0xf]
        %v1072 = vld [vmem:[%s237 + $0xc] sm:$0x1]
        %v1074 = vshrl.u32 %v1069, 16
        %v1076 = vrot.slane %v1074, 4
        %v1077 = vshll.u32 %v1069, 16
        %v1079 = vrot.slane %v1077, 5
        %v1080 = vor.u32 %v1076, %v1079
        %v1081 = vrot.slane %v1080, 4
        %v1083 = vshll.u32 %v1070, 16
        %v1085 = vrot.slane %v1083, 5
        %v1086 = vsel %vm267, %v1081, %v1085
        %v1088 = vshrl.u32 %v1071, 16
        %v1090 = vrot.slane %v1088, 4
        %v1091 = vshll.u32 %v1071, 16
        %v1093 = vrot.slane %v1091, 5
        %v1094 = vor.u32 %v1090, %v1093
        %v1095 = vrot.slane %v1094, 4
        %v1097 = vshll.u32 %v1072, 16
        %v1099 = vrot.slane %v1097, 5
        %v1100 = vsel %vm267, %v1095, %v1099
        %s1101 = scalar_lea.vmem [#allocation6], 256
        %v1102 = vld [vmem:[%s1101] sm:$0xff]
        %v1103 = vld [vmem:[%s1101 + $0x8] sm:$0xff]
        %v1104 = vld [vmem:[%s1101 + $0x10] sm:$0xff]
        %v1105 = vld [vmem:[%s1101 + $0x18] sm:$0xff]
        %v1106 = vunpack.c.l.b16 %v1086
        %v1107 = vunpack.c.l.b16 %v1100
        %v1108 = vpack.c.b16 %v1107, %v1106
        %v1113 = vunpack.c.l.b16 %v1102
        %v1114 = vunpack.c.h.b16 %v1102
        %v1115 = vunpack.c.l.b16 %v1103
        %v1116 = vunpack.c.h.b16 %v1103
        %v1117 = vunpack.c.l.b16 %v1104
        %v1118 = vunpack.c.h.b16 %v1104
        %v1119 = vunpack.c.l.b16 %v1105
        %v1120 = vunpack.c.h.b16 %v1105
        %v1121 = vpack.c.b16 %v1115, %v1113
        %v1122 = vpack.c.b16 %v1116, %v1114
        %v1123 = vpack.c.b16 %v1119, %v1117
        %v1124 = vpack.c.b16 %v1120, %v1118
        %v1130 = vsel %vm324, %v1108, 0
        %1132 = vmatprep.subr.bf16.mxu0 0
        %1133 = vmatpush1.bf16.msra.mxu0 0
        %1134 = vmatprep.subr.bf16.mxu0 0
        %1135 = vmatpush1.bf16.msra.mxu0 0
        %1136 = vmatprep.subr.bf16.mxu0 0
        %1137 = vmatpush1.bf16.msra.mxu0 0
        %1138 = vmatprep.subr.bf16.mxu0 0
        %1139 = vmatpush1.bf16.msra.mxu0 0
        %1140 = vmatprep.subr.bf16.mxu0 0
        %1141 = vmatpush1.bf16.msra.mxu0 0
        %1142 = vmatprep.subr.bf16.mxu0 0
        %1143 = vmatpush1.bf16.msra.mxu0 0
        %1144 = vmatprep.subr.bf16.mxu0 %v1124
        %1145 = vmatpush1.bf16.msra.mxu0 %v1123
        %1146 = vmatprep.subr.bf16.mxu0 %v1122
        %1147 = vmatpush1.bf16.msra.mxu0 %v1121
        %1148 = vmatprep.subr.bf16.mxu0 0
        %1149 = vmatpush2.bf16.msra.mxu0 0
        %1150 = vmatprep.subr.bf16.mxu0 0
        %1151 = vmatpush2.bf16.msra.mxu0 0
        %1152 = vmatprep.subr.bf16.mxu0 0
        %1153 = vmatpush2.bf16.msra.mxu0 0
        %1154 = vmatprep.subr.bf16.mxu0 0
        %1155 = vmatpush2.bf16.msra.mxu0 0
        %1156 = vmatprep.subr.bf16.mxu0 0
        %1157 = vmatpush2.bf16.msra.mxu0 0
        %1158 = vmatprep.subr.bf16.mxu0 0
        %1159 = vmatpush2.bf16.msra.mxu0 0
        %1160 = vmatprep.subr.bf16.mxu0 0
        %1161 = vmatpush2.bf16.msra.mxu0 0
        %1162 = vmatprep.subr.bf16.mxu0 0
        %1163 = vmatpush2.bf16.msra.mxu0 0
        %1164 = vmatprep.mubr.bf16.mxu0 0
        %1165 = vmatmul.mubr.bf16.gmra.mxu0 %v1130
        %v1166 = vpop.f32.mrf.mxu0
        %v1167 = vadd.f32 0.0, %v1166
        %v1168 = vpop.f32.mrf.mxu0
        %v1169 = vadd.f32 0.0, %v1168
        %v1170 = vpop.f32.mrf.mxu0
        %v1171 = vadd.f32 0.0, %v1170
        %v1172 = vpop.f32.mrf.mxu0
        %v1173 = vadd.f32 0.0, %v1172
        %1174 = vdwg.mxu0
        %v1175 = vadd.f32 %v1061, %v1167
        %v1176 = vadd.f32 %v1063, %v1169
        %v1177 = vadd.f32 %v1065, %v1171
        %v1178 = vadd.f32 %v1067, %v1173
        %v1179 = vld [vmem:[%s237] sm:$0xe]
        %v1180 = vld [vmem:[%s237 + $0x8] sm:$0xe]
        %v1185 = vrot.slane %v1179, 5
        %v1186 = vrot.slane %v1185, 4
        %v1187 = vrot.slane %v1070, 5
        %v1188 = vsel %vm917, %v1186, %v1187
        %v1189 = vrot.slane %v1180, 5
        %v1190 = vrot.slane %v1189, 4
        %v1191 = vrot.slane %v1072, 5
        %v1192 = vsel %vm917, %v1190, %v1191
        %s1193 = scalar_lea.vmem [#allocation6], 288
        %v1194 = vld [vmem:[%s1193] sm:$0xff]
        %v1195 = vld [vmem:[%s1193 + $0x8] sm:$0xff]
        %v1196 = vld [vmem:[%s1193 + $0x10] sm:$0xff]
        %v1197 = vld [vmem:[%s1193 + $0x18] sm:$0xff]
        %v1198 = vunpack.c.l.b16 %v1188
        %v1199 = vunpack.c.l.b16 %v1192
        %v1200 = vpack.c.b16 %v1199, %v1198
        %v1205 = vunpack.c.l.b16 %v1194
        %v1206 = vunpack.c.h.b16 %v1194
        %v1207 = vunpack.c.l.b16 %v1195
        %v1208 = vunpack.c.h.b16 %v1195
        %v1209 = vunpack.c.l.b16 %v1196
        %v1210 = vunpack.c.h.b16 %v1196
        %v1211 = vunpack.c.l.b16 %v1197
        %v1212 = vunpack.c.h.b16 %v1197
        %v1213 = vpack.c.b16 %v1207, %v1205
        %v1214 = vpack.c.b16 %v1208, %v1206
        %v1215 = vpack.c.b16 %v1211, %v1209
        %v1216 = vpack.c.b16 %v1212, %v1210
        %v1222 = vsel %vm324, %v1200, 0
        %1224 = vmatprep.subr.bf16.mxu0 0
        %1225 = vmatpush1.bf16.msra.mxu0 0
        %1226 = vmatprep.subr.bf16.mxu0 0
        %1227 = vmatpush1.bf16.msra.mxu0 0
        %1228 = vmatprep.subr.bf16.mxu0 0
        %1229 = vmatpush1.bf16.msra.mxu0 0
        %1230 = vmatprep.subr.bf16.mxu0 0
        %1231 = vmatpush1.bf16.msra.mxu0 0
        %1232 = vmatprep.subr.bf16.mxu0 0
        %1233 = vmatpush1.bf16.msra.mxu0 0
        %1234 = vmatprep.subr.bf16.mxu0 0
        %1235 = vmatpush1.bf16.msra.mxu0 0
        %1236 = vmatprep.subr.bf16.mxu0 %v1216
        %1237 = vmatpush1.bf16.msra.mxu0 %v1215
        %1238 = vmatprep.subr.bf16.mxu0 %v1214
        %1239 = vmatpush1.bf16.msra.mxu0 %v1213
        %1240 = vmatprep.subr.bf16.mxu0 0
        %1241 = vmatpush2.bf16.msra.mxu0 0
        %1242 = vmatprep.subr.bf16.mxu0 0
        %1243 = vmatpush2.bf16.msra.mxu0 0
        %1244 = vmatprep.subr.bf16.mxu0 0
        %1245 = vmatpush2.bf16.msra.mxu0 0
        %1246 = vmatprep.subr.bf16.mxu0 0
        %1247 = vmatpush2.bf16.msra.mxu0 0
        %1248 = vmatprep.subr.bf16.mxu0 0
        %1249 = vmatpush2.bf16.msra.mxu0 0
        %1250 = vmatprep.subr.bf16.mxu0 0
        %1251 = vmatpush2.bf16.msra.mxu0 0
        %1252 = vmatprep.subr.bf16.mxu0 0
        %1253 = vmatpush2.bf16.msra.mxu0 0
        %1254 = vmatprep.subr.bf16.mxu0 0
        %1255 = vmatpush2.bf16.msra.mxu0 0
        %1256 = vmatprep.mubr.bf16.mxu0 0
        %1257 = vmatmul.mubr.bf16.gmra.mxu0 %v1222
        %v1258 = vpop.f32.mrf.mxu0
        %v1259 = vadd.f32 0.0, %v1258
        %v1260 = vpop.f32.mrf.mxu0
        %v1261 = vadd.f32 0.0, %v1260
        %v1262 = vpop.f32.mrf.mxu0
        %v1263 = vadd.f32 0.0, %v1262
        %v1264 = vpop.f32.mrf.mxu0
        %v1265 = vadd.f32 0.0, %v1264
        %1266 = vdwg.mxu0
        %v1267 = vadd.f32 %v1175, %v1259
        %v1268 = vadd.f32 %v1176, %v1261
        %v1269 = vadd.f32 %v1177, %v1263
        %v1270 = vadd.f32 %v1178, %v1265
        %v1271 = vld [vmem:[%s634] sm:$0xf]
        %v1272 = vld [vmem:[%s634 + $0x4] sm:$0x1]
        %v1273 = vld [vmem:[%s634 + $0x8] sm:$0xf]
        %v1274 = vld [vmem:[%s634 + $0xc] sm:$0x1]
        %v1276 = vshrl.u32 %v1271, 16
        %v1278 = vrot.slane %v1276, 4
        %v1279 = vshll.u32 %v1271, 16
        %v1281 = vrot.slane %v1279, 5
        %v1282 = vor.u32 %v1278, %v1281
        %v1283 = vrot.slane %v1282, 4
        %v1285 = vshll.u32 %v1272, 16
        %v1287 = vrot.slane %v1285, 5
        %v1288 = vsel %vm267, %v1283, %v1287
        %v1290 = vshrl.u32 %v1273, 16
        %v1292 = vrot.slane %v1290, 4
        %v1293 = vshll.u32 %v1273, 16
        %v1295 = vrot.slane %v1293, 5
        %v1296 = vor.u32 %v1292, %v1295
        %v1297 = vrot.slane %v1296, 4
        %v1299 = vshll.u32 %v1274, 16
        %v1301 = vrot.slane %v1299, 5
        %v1302 = vsel %vm267, %v1297, %v1301
        %s1303 = scalar_lea.vmem [#allocation6], 320
        %v1304 = vld [vmem:[%s1303] sm:$0xff]
        %v1305 = vld [vmem:[%s1303 + $0x8] sm:$0xff]
        %v1306 = vld [vmem:[%s1303 + $0x10] sm:$0xff]
        %v1307 = vld [vmem:[%s1303 + $0x18] sm:$0xff]
        %v1308 = vunpack.c.l.b16 %v1288
        %v1309 = vunpack.c.l.b16 %v1302
        %v1310 = vpack.c.b16 %v1309, %v1308
        %v1315 = vunpack.c.l.b16 %v1304
        %v1316 = vunpack.c.h.b16 %v1304
        %v1317 = vunpack.c.l.b16 %v1305
        %v1318 = vunpack.c.h.b16 %v1305
        %v1319 = vunpack.c.l.b16 %v1306
        %v1320 = vunpack.c.h.b16 %v1306
        %v1321 = vunpack.c.l.b16 %v1307
        %v1322 = vunpack.c.h.b16 %v1307
        %v1323 = vpack.c.b16 %v1317, %v1315
        %v1324 = vpack.c.b16 %v1318, %v1316
        %v1325 = vpack.c.b16 %v1321, %v1319
        %v1326 = vpack.c.b16 %v1322, %v1320
        %v1332 = vsel %vm324, %v1310, 0
        %1334 = vmatprep.subr.bf16.mxu0 0
        %1335 = vmatpush1.bf16.msra.mxu0 0
        %1336 = vmatprep.subr.bf16.mxu0 0
        %1337 = vmatpush1.bf16.msra.mxu0 0
        %1338 = vmatprep.subr.bf16.mxu0 0
        %1339 = vmatpush1.bf16.msra.mxu0 0
        %1340 = vmatprep.subr.bf16.mxu0 0
        %1341 = vmatpush1.bf16.msra.mxu0 0
        %1342 = vmatprep.subr.bf16.mxu0 0
        %1343 = vmatpush1.bf16.msra.mxu0 0
        %1344 = vmatprep.subr.bf16.mxu0 0
        %1345 = vmatpush1.bf16.msra.mxu0 0
        %1346 = vmatprep.subr.bf16.mxu0 %v1326
        %1347 = vmatpush1.bf16.msra.mxu0 %v1325
        %1348 = vmatprep.subr.bf16.mxu0 %v1324
        %1349 = vmatpush1.bf16.msra.mxu0 %v1323
        %1350 = vmatprep.subr.bf16.mxu0 0
        %1351 = vmatpush2.bf16.msra.mxu0 0
        %1352 = vmatprep.subr.bf16.mxu0 0
        %1353 = vmatpush2.bf16.msra.mxu0 0
        %1354 = vmatprep.subr.bf16.mxu0 0
        %1355 = vmatpush2.bf16.msra.mxu0 0
        %1356 = vmatprep.subr.bf16.mxu0 0
        %1357 = vmatpush2.bf16.msra.mxu0 0
        %1358 = vmatprep.subr.bf16.mxu0 0
        %1359 = vmatpush2.bf16.msra.mxu0 0
        %1360 = vmatprep.subr.bf16.mxu0 0
        %1361 = vmatpush2.bf16.msra.mxu0 0
        %1362 = vmatprep.subr.bf16.mxu0 0
        %1363 = vmatpush2.bf16.msra.mxu0 0
        %1364 = vmatprep.subr.bf16.mxu0 0
        %1365 = vmatpush2.bf16.msra.mxu0 0
        %1366 = vmatprep.mubr.bf16.mxu0 0
        %1367 = vmatmul.mubr.bf16.gmra.mxu0 %v1332
        %v1368 = vpop.f32.mrf.mxu0
        %v1369 = vadd.f32 0.0, %v1368
        %v1370 = vpop.f32.mrf.mxu0
        %v1371 = vadd.f32 0.0, %v1370
        %v1372 = vpop.f32.mrf.mxu0
        %v1373 = vadd.f32 0.0, %v1372
        %v1374 = vpop.f32.mrf.mxu0
        %v1375 = vadd.f32 0.0, %v1374
        %1376 = vdwg.mxu0
        %v1377 = vadd.f32 %v1267, %v1369
        %v1378 = vadd.f32 %v1268, %v1371
        %v1379 = vadd.f32 %v1269, %v1373
        %v1380 = vadd.f32 %v1270, %v1375
        %v1381 = vld [vmem:[%s634] sm:$0xe]
        %v1382 = vld [vmem:[%s634 + $0x8] sm:$0xe]
        %v1387 = vrot.slane %v1381, 5
        %v1388 = vrot.slane %v1387, 4
        %v1389 = vrot.slane %v1272, 5
        %v1390 = vsel %vm917, %v1388, %v1389
        %v1391 = vrot.slane %v1382, 5
        %v1392 = vrot.slane %v1391, 4
        %v1393 = vrot.slane %v1274, 5
        %v1394 = vsel %vm917, %v1392, %v1393
        %s1395 = scalar_lea.vmem [#allocation6], 352
        %v1396 = vld [vmem:[%s1395] sm:$0xff]
        %v1397 = vld [vmem:[%s1395 + $0x8] sm:$0xff]
        %v1398 = vld [vmem:[%s1395 + $0x10] sm:$0xff]
        %v1399 = vld [vmem:[%s1395 + $0x18] sm:$0xff]
        %v1400 = vunpack.c.l.b16 %v1390
        %v1401 = vunpack.c.l.b16 %v1394
        %v1402 = vpack.c.b16 %v1401, %v1400
        %v1407 = vunpack.c.l.b16 %v1396
        %v1408 = vunpack.c.h.b16 %v1396
        %v1409 = vunpack.c.l.b16 %v1397
        %v1410 = vunpack.c.h.b16 %v1397
        %v1411 = vunpack.c.l.b16 %v1398
        %v1412 = vunpack.c.h.b16 %v1398
        %v1413 = vunpack.c.l.b16 %v1399
        %v1414 = vunpack.c.h.b16 %v1399
        %v1415 = vpack.c.b16 %v1409, %v1407
        %v1416 = vpack.c.b16 %v1410, %v1408
        %v1417 = vpack.c.b16 %v1413, %v1411
        %v1418 = vpack.c.b16 %v1414, %v1412
        %v1424 = vsel %vm324, %v1402, 0
        %1426 = vmatprep.subr.bf16.mxu0 0
        %1427 = vmatpush1.bf16.msra.mxu0 0
        %1428 = vmatprep.subr.bf16.mxu0 0
        %1429 = vmatpush1.bf16.msra.mxu0 0
        %1430 = vmatprep.subr.bf16.mxu0 0
        %1431 = vmatpush1.bf16.msra.mxu0 0
        %1432 = vmatprep.subr.bf16.mxu0 0
        %1433 = vmatpush1.bf16.msra.mxu0 0
        %1434 = vmatprep.subr.bf16.mxu0 0
        %1435 = vmatpush1.bf16.msra.mxu0 0
        %1436 = vmatprep.subr.bf16.mxu0 0
        %1437 = vmatpush1.bf16.msra.mxu0 0
        %1438 = vmatprep.subr.bf16.mxu0 %v1418
        %1439 = vmatpush1.bf16.msra.mxu0 %v1417
        %1440 = vmatprep.subr.bf16.mxu0 %v1416
        %1441 = vmatpush1.bf16.msra.mxu0 %v1415
        %1442 = vmatprep.subr.bf16.mxu0 0
        %1443 = vmatpush2.bf16.msra.mxu0 0
        %1444 = vmatprep.subr.bf16.mxu0 0
        %1445 = vmatpush2.bf16.msra.mxu0 0
        %1446 = vmatprep.subr.bf16.mxu0 0
        %1447 = vmatpush2.bf16.msra.mxu0 0
        %1448 = vmatprep.subr.bf16.mxu0 0
        %1449 = vmatpush2.bf16.msra.mxu0 0
        %1450 = vmatprep.subr.bf16.mxu0 0
        %1451 = vmatpush2.bf16.msra.mxu0 0
        %1452 = vmatprep.subr.bf16.mxu0 0
        %1453 = vmatpush2.bf16.msra.mxu0 0
        %1454 = vmatprep.subr.bf16.mxu0 0
        %1455 = vmatpush2.bf16.msra.mxu0 0
        %1456 = vmatprep.subr.bf16.mxu0 0
        %1457 = vmatpush2.bf16.msra.mxu0 0
        %1458 = vmatprep.mubr.bf16.mxu0 0
        %1459 = vmatmul.mubr.bf16.gmra.mxu0 %v1424
        %v1460 = vpop.f32.mrf.mxu0
        %v1461 = vadd.f32 0.0, %v1460
        %v1462 = vpop.f32.mrf.mxu0
        %v1463 = vadd.f32 0.0, %v1462
        %v1464 = vpop.f32.mrf.mxu0
        %v1465 = vadd.f32 0.0, %v1464
        %v1466 = vpop.f32.mrf.mxu0
        %v1467 = vadd.f32 0.0, %v1466
        %1468 = vdwg.mxu0
        %v1469 = vadd.f32 %v1377, %v1461
        %v1470 = vadd.f32 %v1378, %v1463
        %v1471 = vadd.f32 %v1379, %v1465
        %v1472 = vadd.f32 %v1380, %v1467
        %v1473 = vadd.f32 %v1469, %v831
        %v1474 = vadd.f32 %v1470, %v835
        %v1475 = vadd.f32 %v1471, %v831
        %v1476 = vadd.f32 %v1472, %v835
        %vm1477 = vcmp.gt.f32.partialorder %v1473, 0.0
        %vm1478 = vcmp.gt.f32.partialorder %v1474, 0.0
        %vm1479 = vcmp.gt.f32.partialorder %v1475, 0.0
        %vm1480 = vcmp.gt.f32.partialorder %v1476, 0.0
        %v1481 = vmul.f32 %v1473, 0.2
        %v1482 = vmul.f32 %v1474, 0.2
        %v1483 = vmul.f32 %v1475, 0.2
        %v1484 = vmul.f32 %v1476, 0.2
        %v1485 = vsel %vm1477, %v1473, %v1481
        %v1486 = vsel %vm1478, %v1474, %v1482
        %v1487 = vsel %vm1479, %v1475, %v1483
        %v1488 = vsel %vm1480, %v1476, %v1484
        %v1489 = vpack.c.bf16 %v1485, %v1485
        %v1490 = vpack.c.bf16 %v1486, %v1486
        %v1491 = vpack.c.bf16 %v1487, %v1487
        %v1492 = vpack.c.bf16 %v1488, %v1488
        %v1497 = vunpack.c.l.b16 %v1489
        %v1498 = vunpack.c.l.b16 %v1490
        %v1499 = vunpack.c.l.b16 %v1491
        %v1500 = vunpack.c.l.b16 %v1492
        %v1501 = vpack.c.b16 %v1498, %v1497
        %v1502 = vpack.c.b16 %v1500, %v1499
        %1505 = vst [vmem:[%s203 + $0x8] sm:$0xff] %v1501
        %1506 = vst [vmem:[%s203 + $0x18] sm:$0xff] %v1502
        %s1507 = sand.u32 %s97, 1
        %s1508 = scalar_lea.sflag [#allocation5], %s1507
        %s1509 = sand.u32 %s97, 1
        %s1510 = smul.addr %s1509, 32
        %s1511 = scalar_lea.vmem [#allocation8], %s1510
        // Predicated region
        $region41: #{tpu_custom_call.1} parent=31 // pred_check
          %p1512 = pneg %p107
        $region42: #{tpu_custom_call.1} parent=31 // pred_check_branch
          %1514 = sbr.rel (%p1512) target = $region44
        $region43: #{tpu_custom_call.1} parent=31 // pred_region
          %s1516 = ssub.s32 512, 512
          %1517 = vsyncadd %s1508, %s1516
          %s1518 = smul.addr %s21, 8
          %s1519 = smul.addr %s1518, 64
          %s1520 = scalar_lea.hbm %s3, %s1519
          %s1521 = sshll.u32 %s1511, 4
          %s1522 = int_to_ptr.vmem [resolvable:$true] %s1521
          %1527 = dma.vmem_to_hbm [thread:$0]  %s1522, 512, %s1520, %s1508, 256, 256, 16
        $region44: #{tpu_custom_call.1} parent=31 // pred_fallthru
          _
      $region32: #{tpu_custom_call.1} parent=5 // pred_fallthru
        _
      %p1528 = scmp.le.s32.totalorder 2, %s16
      // Predicated region
      $region45: #{tpu_custom_call.1} parent=5 // pred_check
        %p1529 = pneg %p1528
      $region46: #{tpu_custom_call.1} parent=5 // pred_check_branch
        %1531 = sbr.rel (%p1529) target = $region48
      $region47: #{tpu_custom_call.1} parent=5 // pred_region
        %s1532 = ssub.s32 %s16, 2
        // Predicated region
        $region49: #{tpu_custom_call.1} parent=47 // pred_check
          %p1533 = pneg %p113
        $region50: #{tpu_custom_call.1} parent=47 // pred_check_branch
          %1535 = sbr.rel (%p1533) target = $region52
        $region51: #{tpu_custom_call.1} parent=47 // pred_region
          %s1536 = sand.u32 %s98, 1
          %s1537 = scalar_lea.sflag [#allocation5], %s1536
          %s1538 = sand.u32 %s98, 1
          %s1539 = smul.addr %s1538, 32
          %s1540 = scalar_lea.vmem [#allocation8], %s1539
          %1541 = dma.done %s1537, 512
        $region52: #{tpu_custom_call.1} parent=47 // pred_fallthru
          _
      $region48: #{tpu_custom_call.1} parent=5 // pred_fallthru
        _
    $region6: #{tpu_custom_call.1} parent=1 // loop_footer
      %s20 = sadd.s32 1, %s16
    $region7: #{tpu_custom_call.1} parent=1 // loop_footer_branch
      %15 = sbr.rel target = $region3
    $region8: #{tpu_custom_call.1} parent=1 // loop_exit
      _
    %1542 = vsyncpa [#allocation4], 1
    %s1543 = scalar_lea.sflag [#allocation4], 1
    %1544 = vsyncpa %s1543, 1
    %1545 = vsyncpa [#allocation7], 1
    %1546 = vsyncpa [#allocation5], 1
    %s1547 = scalar_lea.sflag [#allocation5], 1
    %1548 = vsyncpa %s1547, 1

</llo_original>
